<compile_context>
chip_gen: v5e
topology: v5e:2x2
jax: 0.10.0
libtpu: 0.0.40
codegen_flags: <defaults>
</compile_context>

<pallas_src>
import functools

import jax
import jax.numpy as jnp
from jax import lax
from jax.experimental import pallas as pl
from jax.experimental.pallas import tpu as pltpu


# ----------------------------- shared helpers --------------------------------

def _layernorm(x, g, b, eps=1e-5):
    mu = jnp.mean(x, axis=-1, keepdims=True)
    var = jnp.mean((x - mu) ** 2, axis=-1, keepdims=True)
    return (x - mu) * lax.rsqrt(var + eps) * g + b


def _self_attention_block(tgt, in_wT, in_b, out_wT, out_b, ln_g, ln_b, num_heads):
    """Batch-invariant self-attention + post-LN on the query tokens (plain XLA)."""
    T, D = tgt.shape
    hd = D // num_heads
    qkv = tgt @ in_wT + in_b                                   # (T, 3D) fused
    q = qkv[:, :D].reshape(T, num_heads, hd).transpose(1, 0, 2) * (1.0 / hd ** 0.5)
    k = qkv[:, D:2 * D].reshape(T, num_heads, hd).transpose(1, 0, 2)
    v = qkv[:, 2 * D:].reshape(T, num_heads, hd).transpose(1, 0, 2)
    s = jnp.einsum('htd,hld->htl', q, k)
    p = jax.nn.softmax(s, axis=-1)
    o = jnp.einsum('htl,hld->htd', p, v).transpose(1, 0, 2).reshape(T, D)
    sa = o @ out_wT + out_b
    return _layernorm(tgt + sa, ln_g, ln_b)


# --------------------------------- kernel ------------------------------------

def perceiver_kernel(x_ref, h1_ref, c_ref, n_ref, vec_ref,
                     ff1_ref, ff1b_ref, ff2_ref,
                     out_ref, h2_s, acc_s, *, num_heads):
    i = pl.program_id(0)
    nsteps = pl.num_programs(0)

    B, L, D = x_ref.shape
    T = h1_ref.shape[0]
    H = num_heads
    BT = B * T

    # ---- step 0: cross-attention (all heads at once) + residual + LN2 --------
    @pl.when(i == 0)
    def _():
        xb = x_ref[...].astype(jnp.bfloat16)                              # (B, L, D)
        # scores for every (head, query-token) row: one einsum, K = D = 64
        cb = jnp.broadcast_to(c_ref[...][None], (B, H * T, D))            # bf16
        s = jnp.einsum('brd,bld->brl', cb, xb,
                       preferred_element_type=jnp.float32)                 # (B, H*T, L)
        # softmax over the memory axis (f32; K-bias of the attention cancels here)
        s = s - jnp.max(s, axis=-1, keepdims=True)
        p = jnp.exp(s)
        p = p * pl.reciprocal(jnp.sum(p, axis=-1, keepdims=True), approx=True)
        # context against raw memory x: one einsum for all heads
        ctx = jnp.einsum('brl,bld->brd', p.astype(jnp.bfloat16), xb,
                         preferred_element_type=jnp.float32)               # (B, H*T, D)
        ctx16 = ctx.astype(jnp.bfloat16)

        # value+output projection folded into N[h] = Wv_h @ Wo_h.
        # Head blocks are contiguous SUBLANE slices (rows h*T:(h+1)*T); each matmul
        # contracts the full D=64 (no 16-lane slicing, no K=16 matmuls).
        ca = jnp.zeros((BT, D), jnp.float32)
        for h in range(H):                                                 # static unroll
            ctx_h = ctx16[:, h * T:(h + 1) * T, :].reshape(BT, D)
            ca = ca + jnp.dot(ctx_h, n_ref[h],
                              preferred_element_type=jnp.float32)
        ca = ca + vec_ref[0:1, :]                                          # bv@Wo + bo

        h1b = jnp.broadcast_to(h1_ref[...][None], (B, T, D)).reshape(BT, D)
        h2_s[...] = _layernorm(h1b + ca, vec_ref[1:2, :], vec_ref[2:3, :])
        acc_s[...] = jnp.zeros_like(acc_s)

    # ---- every step: one dff chunk of the FFN (streamed weights) -------------
    h2b = h2_s[...].astype(jnp.bfloat16)
    mid = jnp.dot(h2b, ff1_ref[...], preferred_element_type=jnp.float32) + ff1b_ref[...]
    mid = jnp.maximum(mid, 0.0)                                            # relu (f32)
    acc_s[...] += jnp.dot(mid.astype(jnp.bfloat16), ff2_ref[...],
                          preferred_element_type=jnp.float32)

    # ---- last step: bias, residual + LN3, mean over T, lane-dense store ------
    @pl.when(i == nsteps - 1)
    def _():
        ff = acc_s[...] + vec_ref[5:6, :]
        h3 = _layernorm(h2_s[...] + ff, vec_ref[3:4, :], vec_ref[4:5, :])
        m = jnp.sum(h3.reshape(B, T, D), axis=1) * (1.0 / T)               # (B, D)
        # single (1, B*D) full-lane store; wrapper reshapes back to (B, D)
        out_ref[...] = jnp.concatenate([m[b:b + 1, :] for b in range(B)], axis=1)


# --------------------------------- wrapper -----------------------------------

@functools.partial(jax.jit, static_argnums=2)
def perceiver_forward(x, params, num_heads):
    B, L, D = x.shape
    T = params["query"].shape[0]
    dff = params["ff1_wT"].shape[1]
    H = num_heads
    hd = D // H

    # ---- batch-invariant prologue (plain XLA) --------------------------------
    # h1 = LN1(tgt + SelfAttn(tgt))
    h1 = _self_attention_block(
        params["query"], params["sa_in_wT"], params["sa_in_b"],
        params["sa_out_wT"], params["sa_out_b"],
        params["ln1_g"], params["ln1_b"], num_heads)

    Wq = params["ca_in_wT"][:, :D]
    Wk = params["ca_in_wT"][:, D:2 * D]
    Wv = params["ca_in_wT"][:, 2 * D:]
    bq = params["ca_in_b"][:, :D]
    bv = params["ca_in_b"][:, 2 * D:]
    Wo = params["ca_out_wT"]
    bo = params["ca_out_b"]

    q_scaled = (h1 @ Wq + bq) * (1.0 / hd ** 0.5)                          # (T, D)
    # C[h*T+t, c] = sum_{d in head h} q_scaled[t, d] * Wk[c, d]   -> scores vs raw x
    qh = q_scaled.reshape(T, H, hd).transpose(1, 0, 2)                     # (H, T, hd)
    Wkh = Wk.reshape(D, H, hd).transpose(1, 0, 2)                          # (H, D, hd)
    C = jnp.einsum('htd,hcd->htc', qh, Wkh).reshape(H * T, D)              # (H*T, D)
    # N[h] = Wv_h @ Wo_h  (value + out projection folded)
    Wvh = Wv.reshape(D, H, hd).transpose(1, 0, 2)                          # (H, D, hd)
    Woh = Wo.reshape(H, hd, D)                                             # (H, hd, D)
    N = jnp.einsum('hcd,hde->hce', Wvh, Woh)                               # (H, D, D)
    # K-bias cancels inside softmax; V-bias contribution folds to bv@Wo (+ out bias)
    const = bv @ Wo + bo                                                   # (1, D)

    # packed small f32 vectors: [const, ln2_g, ln2_b, ln3_g, ln3_b, ff2_b] -> (6, D)
    vecs = jnp.concatenate(
        [const, params["ln2_g"], params["ln2_b"],
         params["ln3_g"], params["ln3_b"], params["ff2_b"]], axis=0)

    bf = lambda a: a.astype(jnp.bfloat16)
    dck = 512 if dff % 512 == 0 else dff                                   # FFN chunk
    nsteps = dff // dck

    args = [x, h1, bf(C), bf(N), vecs,
            bf(params["ff1_wT"]), params["ff1_b"], bf(params["ff2_wT"])]

    in_specs = [
        pl.BlockSpec((B, L, D), lambda i: (0, 0, 0)),       # x            (resident)
        pl.BlockSpec((T, D), lambda i: (0, 0)),             # h1           (resident)
        pl.BlockSpec((H * T, D), lambda i: (0, 0)),         # C            (resident)
        pl.BlockSpec((H, D, D), lambda i: (0, 0, 0)),       # N            (resident)
        pl.BlockSpec((6, D), lambda i: (0, 0)),             # packed vecs  (resident)
        pl.BlockSpec((D, dck), lambda i: (0, i)),           # ff1 weight   (streamed)
        pl.BlockSpec((1, dck), lambda i: (0, i)),           # ff1 bias     (streamed)
        pl.BlockSpec((dck, D), lambda i: (i, 0)),           # ff2 weight   (streamed)
    ]

    flops = (4 * B * H * T * L * D            # scores + p@x
             + 2 * H * B * T * D * D          # folded out-projection
             + 4 * B * T * D * dff)           # FFN
    bytes_accessed = (x.size * 4 + T * D * 4 + H * T * D * 2 + H * D * D * 2
                      + 6 * D * 4 + D * dff * 2 + dff * 4 + dff * D * 2 + B * D * 4)

    out_row = pl.pallas_call(
        functools.partial(perceiver_kernel, num_heads=num_heads),
        out_shape=jax.ShapeDtypeStruct((1, B * D), jnp.float32),
        grid=(nsteps,),
        in_specs=in_specs,
        out_specs=pl.BlockSpec((1, B * D), lambda i: (0, 0)),
        scratch_shapes=[
            pltpu.VMEM((B * T, D), jnp.float32),            # h2 (post cross-attn LN)
            pltpu.VMEM((B * T, D), jnp.float32),            # FFN accumulator
        ],
        compiler_params=pltpu.CompilerParams(
            dimension_semantics=("arbitrary",)),
        cost_estimate=pl.CostEstimate(
            flops=flops,
            transcendentals=B * H * T * L + 4 * B * T,
            bytes_accessed=bytes_accessed),
    )(*args)

    return out_row.reshape(B, D)


# ----------------------------- parameter setup --------------------------------

def init_params(key, query_token, hidden_dim, dim_feedforward=2048):
    """Deterministic synthetic parameters matching nn.TransformerDecoderLayer
    (d_model=hidden_dim, single layer) + nn.Embedding(query_token, hidden_dim).
    Linear / in_proj weights are stored pre-transposed as (in, out)."""
    D = hidden_dim
    ks = jax.random.split(key, 13)

    def w(k, shape, scale=0.02):
        return (scale * jax.random.normal(k, shape)).astype(jnp.float32)

    return dict(
        query=w(ks[0], (query_token, D), 1.0),           # nn.Embedding weight ~ N(0,1)
        sa_in_wT=w(ks[1], (D, 3 * D)),
        sa_in_b=w(ks[2], (1, 3 * D)),
        sa_out_wT=w(ks[3], (D, D)),
        sa_out_b=w(ks[4], (1, D)),
        ca_in_wT=w(ks[5], (D, 3 * D)),
        ca_in_b=w(ks[6], (1, 3 * D)),
        ca_out_wT=w(ks[7], (D, D)),
        ca_out_b=w(ks[8], (1, D)),
        ln1_g=jnp.ones((1, D), jnp.float32), ln1_b=jnp.zeros((1, D), jnp.float32),
        ln2_g=jnp.ones((1, D), jnp.float32), ln2_b=jnp.zeros((1, D), jnp.float32),
        ln3_g=jnp.ones((1, D), jnp.float32), ln3_b=jnp.zeros((1, D), jnp.float32),
        ff1_wT=w(ks[9], (D, dim_feedforward)),
        ff1_b=w(ks[10], (1, dim_feedforward)),
        ff2_wT=w(ks[11], (dim_feedforward, D)),
        ff2_b=w(ks[12], (1, D)),
    )


if __name__ == "__main__":
    # Small shapes consistent with the module's forward: x is (B, L, D).
    B, L = 2, 8
    query_token, hidden_dim, num_heads = 16, 64, 4
    dim_feedforward = 2048  # PyTorch TransformerDecoderLayer default

    key = jax.random.PRNGKey(0)
    kx, kp = jax.random.split(key)
    x = jax.random.normal(kx, (B, L, hidden_dim), dtype=jnp.float32)
    params = init_params(kp, query_token, hidden_dim, dim_feedforward)

    out = perceiver_forward(x, params, num_heads)
    out = jax.block_until_ready(out)
    assert out.shape == (B, hidden_dim), out.shape
    assert bool(jnp.all(jnp.isfinite(out)))
    print("KERNEL_OK")
</pallas_src>

<mosaic_0001>
module attributes {stable_mosaic.version = 11 : i64} {
  func.func @perceiver_kernel(%arg0: i32, %arg1: memref<2x8x64xf32, #tpu.memory_space<vmem>>, %arg2: memref<16x64xf32, #tpu.memory_space<vmem>>, %arg3: memref<64x64xbf16, #tpu.memory_space<vmem>>, %arg4: memref<4x64x64xbf16, #tpu.memory_space<vmem>>, %arg5: memref<6x64xf32, #tpu.memory_space<vmem>>, %arg6: memref<64x512xbf16, #tpu.memory_space<vmem>>, %arg7: memref<1x512xf32, #tpu.memory_space<vmem>>, %arg8: memref<512x64xbf16, #tpu.memory_space<vmem>>, %arg9: memref<1x128xf32, #tpu.memory_space<vmem>>, %arg10: memref<32x64xf32, #tpu.memory_space<vmem>>, %arg11: memref<32x64xf32, #tpu.memory_space<vmem>>) attributes {dimension_semantics = [#tpu.dimension_semantics<arbitrary>], iteration_bounds = array<i64: 4>, scalar_prefetch = 0 : i64, scratch_operands = 2 : i64, tpu.core_type = #tpu.core_type<tc>, window_params = [{pipeline_mode = #tpu.pipeline_mode<synchronous>, transform_indices = @transform_0, window_bounds = array<i64: 2, 8, 64>}, {pipeline_mode = #tpu.pipeline_mode<synchronous>, transform_indices = @transform_1, window_bounds = array<i64: 16, 64>}, {pipeline_mode = #tpu.pipeline_mode<synchronous>, transform_indices = @transform_2, window_bounds = array<i64: 64, 64>}, {pipeline_mode = #tpu.pipeline_mode<synchronous>, transform_indices = @transform_3, window_bounds = array<i64: 4, 64, 64>}, {pipeline_mode = #tpu.pipeline_mode<synchronous>, transform_indices = @transform_4, window_bounds = array<i64: 6, 64>}, {transform_indices = @transform_5, window_bounds = array<i64: 64, 512>}, {transform_indices = @transform_6, window_bounds = array<i64: 1, 512>}, {transform_indices = @transform_7, window_bounds = array<i64: 512, 64>}, {pipeline_mode = #tpu.pipeline_mode<synchronous>, transform_indices = @transform_8, window_bounds = array<i64: 1, 128>}]} {
    %c0_i32 = arith.constant 0 : i32
    %0 = arith.cmpi eq, %arg0, %c0_i32 : i32
    %1 = arith.extui %0 : i1 to i32
    %c0_i32_0 = arith.constant 0 : i32
    %2 = arith.cmpi ne, %1, %c0_i32_0 : i32
    scf.if %2 {
      %c0_15 = arith.constant 0 : index
      %c0_16 = arith.constant 0 : index
      %c0_17 = arith.constant 0 : index
      %21 = vector.load %arg1[%c0_15, %c0_16, %c0_17] : memref<2x8x64xf32, #tpu.memory_space<vmem>>, vector<2x8x64xf32>
      %22 = arith.truncf %21 : vector<2x8x64xf32> to vector<2x8x64xbf16>
      %c0_18 = arith.constant 0 : index
      %c0_19 = arith.constant 0 : index
      %23 = vector.load %arg3[%c0_18, %c0_19] : memref<64x64xbf16, #tpu.memory_space<vmem>>, vector<64x64xbf16>
      %24 = vector.shape_cast %23 : vector<64x64xbf16> to vector<1x64x64xbf16>
      %25 = vector.shape_cast %24 : vector<1x64x64xbf16> to vector<1x64x64xbf16>
      %26 = vector.broadcast %25 : vector<1x64x64xbf16> to vector<2x64x64xbf16>
      "tpu.trace_start"() <{level = 10 : i32, message = "brd,bld->brl"}> : () -> ()
      %cst_20 = arith.constant dense<0.000000e+00> : vector<2x64x8xf32>
      %27 = tpu.matmul %26, %22, %cst_20 {dimension_numbers = #tpu.dot_dimension_numbers<[2], [2], [1], [1], [0, 0, 0, 1, 1, 1], [0], [0]>} : vector<2x64x64xbf16>, vector<2x8x64xbf16>, vector<2x64x8xf32> -> vector<2x64x8xf32>
      "tpu.trace_stop"() : () -> ()
      %cst_21 = arith.constant dense<0xFF800000> : vector<2x64xf32>
      %28 = vector.multi_reduction <maximumf>, %27, %cst_21 [2] : vector<2x64x8xf32> to vector<2x64xf32>
      %29 = vector.shape_cast %28 : vector<2x64xf32> to vector<2x64x1xf32>
      %30 = vector.broadcast %29 : vector<2x64x1xf32> to vector<2x64x8xf32>
      %31 = arith.subf %27, %30 : vector<2x64x8xf32>
      %32 = math.exp %31 : vector<2x64x8xf32>
      %cst_22 = arith.constant dense<0.000000e+00> : vector<2x64xf32>
      %33 = vector.multi_reduction <add>, %32, %cst_22 [2] : vector<2x64x8xf32> to vector<2x64xf32>
      %34 = vector.shape_cast %33 : vector<2x64xf32> to vector<2x64x1xf32>
      %35 = tpu.reciprocal %34 {approx = true} : vector<2x64x1xf32> -> vector<2x64x1xf32>
      %36 = vector.broadcast %35 : vector<2x64x1xf32> to vector<2x64x8xf32>
      %37 = arith.mulf %32, %36 : vector<2x64x8xf32>
      %38 = arith.truncf %37 : vector<2x64x8xf32> to vector<2x64x8xbf16>
      "tpu.trace_start"() <{level = 10 : i32, message = "brl,bld->brd"}> : () -> ()
      %cst_23 = arith.constant dense<0.000000e+00> : vector<2x64x64xf32>
      %39 = tpu.matmul %38, %22, %cst_23 {dimension_numbers = #tpu.dot_dimension_numbers<[2], [1], [1], [2], [0, 0, 0, 1, 1, 2], [0], [0]>} : vector<2x64x8xbf16>, vector<2x8x64xbf16>, vector<2x64x64xf32> -> vector<2x64x64xf32>
      "tpu.trace_stop"() : () -> ()
      %40 = arith.truncf %39 : vector<2x64x64xf32> to vector<2x64x64xbf16>
      %cst_24 = arith.constant 0.000000e+00 : f32
      %41 = vector.broadcast %cst_24 : f32 to vector<32x64xf32>
      %42 = vector.extract_strided_slice %40 {offsets = [0, 0, 0], sizes = [2, 16, 64], strides = [1, 1, 1]} : vector<2x64x64xbf16> to vector<2x16x64xbf16>
      %43 = vector.shape_cast %42 : vector<2x16x64xbf16> to vector<32x64xbf16>
      %c0_25 = arith.constant 0 : index
      %c0_26 = arith.constant 0 : index
      %c0_27 = arith.constant 0 : index
      %44 = vector.load %arg4[%c0_25, %c0_26, %c0_27] : memref<4x64x64xbf16, #tpu.memory_space<vmem>>, vector<1x64x64xbf16>
      %45 = vector.shape_cast %44 : vector<1x64x64xbf16> to vector<64x64xbf16>
      %cst_28 = arith.constant dense<0.000000e+00> : vector<32x64xf32>
      %46 = tpu.matmul %43, %45, %cst_28 {dimension_numbers = #tpu.dot_dimension_numbers<[1], [0], [0], [1], [0, 0, 1, 1], [], []>} : vector<32x64xbf16>, vector<64x64xbf16>, vector<32x64xf32> -> vector<32x64xf32>
      %47 = arith.addf %41, %46 : vector<32x64xf32>
      %48 = vector.extract_strided_slice %40 {offsets = [0, 16, 0], sizes = [2, 16, 64], strides = [1, 1, 1]} : vector<2x64x64xbf16> to vector<2x16x64xbf16>
      %49 = vector.shape_cast %48 : vector<2x16x64xbf16> to vector<32x64xbf16>
      %c1 = arith.constant 1 : index
      %c0_29 = arith.constant 0 : index
      %c0_30 = arith.constant 0 : index
      %50 = vector.load %arg4[%c1, %c0_29, %c0_30] : memref<4x64x64xbf16, #tpu.memory_space<vmem>>, vector<1x64x64xbf16>
      %51 = vector.shape_cast %50 : vector<1x64x64xbf16> to vector<64x64xbf16>
      %cst_31 = arith.constant dense<0.000000e+00> : vector<32x64xf32>
      %52 = tpu.matmul %49, %51, %cst_31 {dimension_numbers = #tpu.dot_dimension_numbers<[1], [0], [0], [1], [0, 0, 1, 1], [], []>} : vector<32x64xbf16>, vector<64x64xbf16>, vector<32x64xf32> -> vector<32x64xf32>
      %53 = arith.addf %47, %52 : vector<32x64xf32>
      %54 = vector.extract_strided_slice %40 {offsets = [0, 32, 0], sizes = [2, 16, 64], strides = [1, 1, 1]} : vector<2x64x64xbf16> to vector<2x16x64xbf16>
      %55 = vector.shape_cast %54 : vector<2x16x64xbf16> to vector<32x64xbf16>
      %c2 = arith.constant 2 : index
      %c0_32 = arith.constant 0 : index
      %c0_33 = arith.constant 0 : index
      %56 = vector.load %arg4[%c2, %c0_32, %c0_33] : memref<4x64x64xbf16, #tpu.memory_space<vmem>>, vector<1x64x64xbf16>
      %57 = vector.shape_cast %56 : vector<1x64x64xbf16> to vector<64x64xbf16>
      %cst_34 = arith.constant dense<0.000000e+00> : vector<32x64xf32>
      %58 = tpu.matmul %55, %57, %cst_34 {dimension_numbers = #tpu.dot_dimension_numbers<[1], [0], [0], [1], [0, 0, 1, 1], [], []>} : vector<32x64xbf16>, vector<64x64xbf16>, vector<32x64xf32> -> vector<32x64xf32>
      %59 = arith.addf %53, %58 : vector<32x64xf32>
      %60 = vector.extract_strided_slice %40 {offsets = [0, 48, 0], sizes = [2, 16, 64], strides = [1, 1, 1]} : vector<2x64x64xbf16> to vector<2x16x64xbf16>
      %61 = vector.shape_cast %60 : vector<2x16x64xbf16> to vector<32x64xbf16>
      %c3 = arith.constant 3 : index
      %c0_35 = arith.constant 0 : index
      %c0_36 = arith.constant 0 : index
      %62 = vector.load %arg4[%c3, %c0_35, %c0_36] : memref<4x64x64xbf16, #tpu.memory_space<vmem>>, vector<1x64x64xbf16>
      %63 = vector.shape_cast %62 : vector<1x64x64xbf16> to vector<64x64xbf16>
      %cst_37 = arith.constant dense<0.000000e+00> : vector<32x64xf32>
      %64 = tpu.matmul %61, %63, %cst_37 {dimension_numbers = #tpu.dot_dimension_numbers<[1], [0], [0], [1], [0, 0, 1, 1], [], []>} : vector<32x64xbf16>, vector<64x64xbf16>, vector<32x64xf32> -> vector<32x64xf32>
      %65 = arith.addf %59, %64 : vector<32x64xf32>
      %c0_38 = arith.constant 0 : index
      %c0_39 = arith.constant 0 : index
      %66 = vector.load %arg5[%c0_38, %c0_39] : memref<6x64xf32, #tpu.memory_space<vmem>>, vector<1x64xf32>
      %67 = vector.broadcast %66 : vector<1x64xf32> to vector<32x64xf32>
      %68 = arith.addf %65, %67 : vector<32x64xf32>
      %c0_40 = arith.constant 0 : index
      %c0_41 = arith.constant 0 : index
      %69 = vector.load %arg2[%c0_40, %c0_41] : memref<16x64xf32, #tpu.memory_space<vmem>>, vector<16x64xf32>
      %70 = vector.shape_cast %69 : vector<16x64xf32> to vector<1x16x64xf32>
      %71 = vector.shape_cast %70 : vector<1x16x64xf32> to vector<1x16x64xf32>
      %72 = vector.broadcast %71 : vector<1x16x64xf32> to vector<2x16x64xf32>
      %73 = vector.shape_cast %72 : vector<2x16x64xf32> to vector<32x64xf32>
      %74 = arith.addf %73, %68 : vector<32x64xf32>
      %c1_42 = arith.constant 1 : index
      %c0_43 = arith.constant 0 : index
      %75 = vector.load %arg5[%c1_42, %c0_43] : memref<6x64xf32, #tpu.memory_space<vmem>>, vector<1x64xf32>
      %c2_44 = arith.constant 2 : index
      %c0_45 = arith.constant 0 : index
      %76 = vector.load %arg5[%c2_44, %c0_45] : memref<6x64xf32, #tpu.memory_space<vmem>>, vector<1x64xf32>
      %cst_46 = arith.constant dense<0.000000e+00> : vector<32xf32>
      %77 = vector.multi_reduction <add>, %74, %cst_46 [1] : vector<32x64xf32> to vector<32xf32>
      %78 = vector.shape_cast %77 : vector<32xf32> to vector<32x1xf32>
      %cst_47 = arith.constant 6.400000e+01 : f32
      %79 = vector.broadcast %cst_47 : f32 to vector<32x1xf32>
      %80 = arith.divf %78, %79 : vector<32x1xf32>
      %81 = vector.broadcast %80 : vector<32x1xf32> to vector<32x64xf32>
      %82 = arith.subf %74, %81 : vector<32x64xf32>
      %83 = arith.mulf %82, %82 : vector<32x64xf32>
      %cst_48 = arith.constant dense<0.000000e+00> : vector<32xf32>
      %84 = vector.multi_reduction <add>, %83, %cst_48 [1] : vector<32x64xf32> to vector<32xf32>
      %85 = vector.shape_cast %84 : vector<32xf32> to vector<32x1xf32>
      %cst_49 = arith.constant 6.400000e+01 : f32
      %86 = vector.broadcast %cst_49 : f32 to vector<32x1xf32>
      %87 = arith.divf %85, %86 : vector<32x1xf32>
      %88 = vector.broadcast %80 : vector<32x1xf32> to vector<32x64xf32>
      %89 = arith.subf %74, %88 : vector<32x64xf32>
      %cst_50 = arith.constant 9.99999974E-6 : f32
      %90 = vector.broadcast %cst_50 : f32 to vector<32x1xf32>
      %91 = arith.addf %87, %90 : vector<32x1xf32>
      %92 = math.rsqrt %91 : vector<32x1xf32>
      %93 = vector.broadcast %92 : vector<32x1xf32> to vector<32x64xf32>
      %94 = arith.mulf %89, %93 : vector<32x64xf32>
      %95 = vector.broadcast %75 : vector<1x64xf32> to vector<32x64xf32>
      %96 = arith.mulf %94, %95 : vector<32x64xf32>
      %97 = vector.broadcast %76 : vector<1x64xf32> to vector<32x64xf32>
      %98 = arith.addf %96, %97 : vector<32x64xf32>
      %c0_51 = arith.constant 0 : index
      %c0_52 = arith.constant 0 : index
      %99 = vector.load %arg10[%c0_51, %c0_52] : memref<32x64xf32, #tpu.memory_space<vmem>>, vector<32x64xf32>
      tpu.vector_store %arg10[%c0_51, %c0_52], %98 {strides = array<i32>} : memref<32x64xf32, #tpu.memory_space<vmem>>, vector<32x64xf32>,
      %cst_53 = arith.constant 0.000000e+00 : f32
      %100 = vector.broadcast %cst_53 : f32 to vector<32x64xf32>
      %c0_54 = arith.constant 0 : index
      %c0_55 = arith.constant 0 : index
      %101 = vector.load %arg11[%c0_54, %c0_55] : memref<32x64xf32, #tpu.memory_space<vmem>>, vector<32x64xf32>
      tpu.vector_store %arg11[%c0_54, %c0_55], %100 {strides = array<i32>} : memref<32x64xf32, #tpu.memory_space<vmem>>, vector<32x64xf32>,
    } else {
    }
    %c0 = arith.constant 0 : index
    %c0_1 = arith.constant 0 : index
    %3 = vector.load %arg10[%c0, %c0_1] : memref<32x64xf32, #tpu.memory_space<vmem>>, vector<32x64xf32>
    %4 = arith.truncf %3 : vector<32x64xf32> to vector<32x64xbf16>
    %c0_2 = arith.constant 0 : index
    %c0_3 = arith.constant 0 : index
    %5 = vector.load %arg6[%c0_2, %c0_3] : memref<64x512xbf16, #tpu.memory_space<vmem>>, vector<64x512xbf16>
    %cst = arith.constant dense<0.000000e+00> : vector<32x512xf32>
    %6 = tpu.matmul %4, %5, %cst {dimension_numbers = #tpu.dot_dimension_numbers<[1], [0], [0], [1], [0, 0, 1, 1], [], []>} : vector<32x64xbf16>, vector<64x512xbf16>, vector<32x512xf32> -> vector<32x512xf32>
    %c0_4 = arith.constant 0 : index
    %c0_5 = arith.constant 0 : index
    %7 = vector.load %arg7[%c0_4, %c0_5] : memref<1x512xf32, #tpu.memory_space<vmem>>, vector<1x512xf32>
    %8 = vector.broadcast %7 : vector<1x512xf32> to vector<32x512xf32>
    %9 = arith.addf %6, %8 : vector<32x512xf32>
    %cst_6 = arith.constant 0.000000e+00 : f32
    %10 = vector.broadcast %cst_6 : f32 to vector<32x512xf32>
    %11 = arith.maximumf %9, %10 : vector<32x512xf32>
    %c0_7 = arith.constant 0 : index
    %c0_8 = arith.constant 0 : index
    %12 = vector.load %arg11[%c0_7, %c0_8] : memref<32x64xf32, #tpu.memory_space<vmem>>, vector<32x64xf32>
    %13 = arith.truncf %11 : vector<32x512xf32> to vector<32x512xbf16>
    %c0_9 = arith.constant 0 : index
    %c0_10 = arith.constant 0 : index
    %14 = vector.load %arg8[%c0_9, %c0_10] : memref<512x64xbf16, #tpu.memory_space<vmem>>, vector<512x64xbf16>
    %cst_11 = arith.constant dense<0.000000e+00> : vector<32x64xf32>
    %15 = tpu.matmul %13, %14, %cst_11 {dimension_numbers = #tpu.dot_dimension_numbers<[1], [0], [0], [1], [0, 0, 1, 1], [], []>} : vector<32x512xbf16>, vector<512x64xbf16>, vector<32x64xf32> -> vector<32x64xf32>
    %16 = arith.addf %12, %15 : vector<32x64xf32>
    %c0_12 = arith.constant 0 : index
    %c0_13 = arith.constant 0 : index
    %17 = vector.load %arg11[%c0_12, %c0_13] : memref<32x64xf32, #tpu.memory_space<vmem>>, vector<32x64xf32>
    tpu.vector_store %arg11[%c0_12, %c0_13], %16 {strides = array<i32>} : memref<32x64xf32, #tpu.memory_space<vmem>>, vector<32x64xf32>,
    %c3_i32 = arith.constant 3 : i32
    %18 = arith.cmpi eq, %arg0, %c3_i32 : i32
    %19 = arith.extui %18 : i1 to i32
    %c0_i32_14 = arith.constant 0 : i32
    %20 = arith.cmpi ne, %19, %c0_i32_14 : i32
    scf.if %20 {
      %c0_15 = arith.constant 0 : index
      %c0_16 = arith.constant 0 : index
      %21 = vector.load %arg11[%c0_15, %c0_16] : memref<32x64xf32, #tpu.memory_space<vmem>>, vector<32x64xf32>
      %c5 = arith.constant 5 : index
      %c0_17 = arith.constant 0 : index
      %22 = vector.load %arg5[%c5, %c0_17] : memref<6x64xf32, #tpu.memory_space<vmem>>, vector<1x64xf32>
      %23 = vector.broadcast %22 : vector<1x64xf32> to vector<32x64xf32>
      %24 = arith.addf %21, %23 : vector<32x64xf32>
      %c0_18 = arith.constant 0 : index
      %c0_19 = arith.constant 0 : index
      %25 = vector.load %arg10[%c0_18, %c0_19] : memref<32x64xf32, #tpu.memory_space<vmem>>, vector<32x64xf32>
      %26 = arith.addf %25, %24 : vector<32x64xf32>
      %c3 = arith.constant 3 : index
      %c0_20 = arith.constant 0 : index
      %27 = vector.load %arg5[%c3, %c0_20] : memref<6x64xf32, #tpu.memory_space<vmem>>, vector<1x64xf32>
      %c4 = arith.constant 4 : index
      %c0_21 = arith.constant 0 : index
      %28 = vector.load %arg5[%c4, %c0_21] : memref<6x64xf32, #tpu.memory_space<vmem>>, vector<1x64xf32>
      %cst_22 = arith.constant dense<0.000000e+00> : vector<32xf32>
      %29 = vector.multi_reduction <add>, %26, %cst_22 [1] : vector<32x64xf32> to vector<32xf32>
      %30 = vector.shape_cast %29 : vector<32xf32> to vector<32x1xf32>
      %cst_23 = arith.constant 6.400000e+01 : f32
      %31 = vector.broadcast %cst_23 : f32 to vector<32x1xf32>
      %32 = arith.divf %30, %31 : vector<32x1xf32>
      %33 = vector.broadcast %32 : vector<32x1xf32> to vector<32x64xf32>
      %34 = arith.subf %26, %33 : vector<32x64xf32>
      %35 = arith.mulf %34, %34 : vector<32x64xf32>
      %cst_24 = arith.constant dense<0.000000e+00> : vector<32xf32>
      %36 = vector.multi_reduction <add>, %35, %cst_24 [1] : vector<32x64xf32> to vector<32xf32>
      %37 = vector.shape_cast %36 : vector<32xf32> to vector<32x1xf32>
      %cst_25 = arith.constant 6.400000e+01 : f32
      %38 = vector.broadcast %cst_25 : f32 to vector<32x1xf32>
      %39 = arith.divf %37, %38 : vector<32x1xf32>
      %40 = vector.broadcast %32 : vector<32x1xf32> to vector<32x64xf32>
      %41 = arith.subf %26, %40 : vector<32x64xf32>
      %cst_26 = arith.constant 9.99999974E-6 : f32
      %42 = vector.broadcast %cst_26 : f32 to vector<32x1xf32>
      %43 = arith.addf %39, %42 : vector<32x1xf32>
      %44 = math.rsqrt %43 : vector<32x1xf32>
      %45 = vector.broadcast %44 : vector<32x1xf32> to vector<32x64xf32>
      %46 = arith.mulf %41, %45 : vector<32x64xf32>
      %47 = vector.broadcast %27 : vector<1x64xf32> to vector<32x64xf32>
      %48 = arith.mulf %46, %47 : vector<32x64xf32>
      %49 = vector.broadcast %28 : vector<1x64xf32> to vector<32x64xf32>
      %50 = arith.addf %48, %49 : vector<32x64xf32>
      %51 = vector.shape_cast %50 : vector<32x64xf32> to vector<2x16x64xf32>
      %cst_27 = arith.constant dense<0.000000e+00> : vector<2x64xf32>
      %52 = vector.multi_reduction <add>, %51, %cst_27 [1] : vector<2x16x64xf32> to vector<2x64xf32>
      %cst_28 = arith.constant 6.250000e-02 : f32
      %53 = vector.broadcast %cst_28 : f32 to vector<2x64xf32>
      %54 = arith.mulf %52, %53 : vector<2x64xf32>
      %55 = vector.extract_strided_slice %54 {offsets = [0, 0], sizes = [1, 64], strides = [1, 1]} : vector<2x64xf32> to vector<1x64xf32>
      %56 = vector.extract_strided_slice %54 {offsets = [1, 0], sizes = [1, 64], strides = [1, 1]} : vector<2x64xf32> to vector<1x64xf32>
      %57 = tpu.concatenate %55, %56 in 1 : vector<1x64xf32>, vector<1x64xf32> -> vector<1x128xf32>
      %c0_29 = arith.constant 0 : index
      %c0_30 = arith.constant 0 : index
      %58 = vector.load %arg9[%c0_29, %c0_30] : memref<1x128xf32, #tpu.memory_space<vmem>>, vector<1x128xf32>
      tpu.vector_store %arg9[%c0_29, %c0_30], %57 {strides = array<i32>} : memref<1x128xf32, #tpu.memory_space<vmem>>, vector<1x128xf32>,
    } else {
    }
    return
  }
  func.func @transform_0(%arg0: i32) -> (i32, i32, i32) {
    %c0_i32 = arith.constant 0 : i32
    %c0_i32_0 = arith.constant 0 : i32
    %c0_i32_1 = arith.constant 0 : i32
    %c0_i32_2 = arith.constant 0 : i32
    return %c0_i32, %c0_i32_0, %c0_i32_1 : i32, i32, i32
  }
  func.func @transform_1(%arg0: i32) -> (i32, i32) {
    %c0_i32 = arith.constant 0 : i32
    %c0_i32_0 = arith.constant 0 : i32
    %c0_i32_1 = arith.constant 0 : i32
    return %c0_i32, %c0_i32_0 : i32, i32
  }
  func.func @transform_2(%arg0: i32) -> (i32, i32) {
    %c0_i32 = arith.constant 0 : i32
    %c0_i32_0 = arith.constant 0 : i32
    %c0_i32_1 = arith.constant 0 : i32
    return %c0_i32, %c0_i32_0 : i32, i32
  }
  func.func @transform_3(%arg0: i32) -> (i32, i32, i32) {
    %c0_i32 = arith.constant 0 : i32
    %c0_i32_0 = arith.constant 0 : i32
    %c0_i32_1 = arith.constant 0 : i32
    %c0_i32_2 = arith.constant 0 : i32
    return %c0_i32, %c0_i32_0, %c0_i32_1 : i32, i32, i32
  }
  func.func @transform_4(%arg0: i32) -> (i32, i32) {
    %c0_i32 = arith.constant 0 : i32
    %c0_i32_0 = arith.constant 0 : i32
    %c0_i32_1 = arith.constant 0 : i32
    return %c0_i32, %c0_i32_0 : i32, i32
  }
  func.func @transform_5(%arg0: i32) -> (i32, i32) {
    %c0_i32 = arith.constant 0 : i32
    %c0_i32_0 = arith.constant 0 : i32
    return %c0_i32, %arg0 : i32, i32
  }
  func.func @transform_6(%arg0: i32) -> (i32, i32) {
    %c0_i32 = arith.constant 0 : i32
    %c0_i32_0 = arith.constant 0 : i32
    return %c0_i32, %arg0 : i32, i32
  }
  func.func @transform_7(%arg0: i32) -> (i32, i32) {
    %c0_i32 = arith.constant 0 : i32
    %c0_i32_0 = arith.constant 0 : i32
    return %arg0, %c0_i32 : i32, i32
  }
  func.func @transform_8(%arg0: i32) -> (i32, i32) {
    %c0_i32 = arith.constant 0 : i32
    %c0_i32_0 = arith.constant 0 : i32
    %c0_i32_1 = arith.constant 0 : i32
    return %c0_i32, %c0_i32_0 : i32, i32
  }
}

</mosaic_0001>

<llo_original>
// kernel: perceiver_forward.1
$region0: #{perceiver_forward.1}
  #allocation0 [shape = 'u32[]', space=smem, size = 0x4, offset = 0x4, fixed_abs, tag = 'smem constant byte address 0x4 - core index']
  #allocation1 [shape = 'u32[72,128]{1,0:T(1,128)}', space=vmem, size = 0x9000, scoped, tag = 'internal scratch']
  #allocation2 [shape = 'f32[32,64]{1,0:T(8,128)}', space=vmem, size = 0x4000, scoped, tag = 'scratch operand']
  #allocation3 [shape = 'f32[32,64]{1,0:T(8,128)}', space=vmem, size = 0x4000, scoped, tag = 'scratch operand']
  %s0 = inlined_call_operand.vmem [shape: f32[2,8,64], index: 0, kind: input, shape index: {}]
  %s1 = inlined_call_operand.vmem [shape: f32[16,64], index: 1, kind: input, shape index: {}]
  %s2 = inlined_call_operand.vmem [shape: bf16[64,64], index: 2, kind: input, shape index: {}]
  %s3 = inlined_call_operand.vmem [shape: bf16[4,64,64], index: 3, kind: input, shape index: {}]
  %s4 = inlined_call_operand.vmem [shape: f32[6,64], index: 4, kind: input, shape index: {}]
  %s5 = inlined_call_operand.vmem [shape: bf16[64,2048], index: 5, kind: input, shape index: {}]
  %s6 = inlined_call_operand.vmem [shape: f32[1,2048], index: 6, kind: input, shape index: {}]
  %s7 = inlined_call_operand.vmem [shape: bf16[2048,64], index: 7, kind: input, shape index: {}]
  %s8 = inlined_call_operand.vmem [shape: f32[1,128], index: 8, kind: output, shape index: {}]
  %s9 = sld [smem:[#allocation0]]
  $region96: #{perceiver_forward.1} parent=0
    _
  %s11 = ssub.s32 1, %s9
  %s12 = scalar_select 0, %s11, %s9
  $region1: #{perceiver_forward.1} parent=0
    #allocation4 [shape = 'u8[131072]{0}', space=vmem, size = 0x20000, scoped, tag = 'input window, operand 5']
    loop: start=0, step=1, limit=6
    $region2: #{perceiver_forward.1} parent=1 // loop_pre_header
      _
    $region3: #{perceiver_forward.1} parent=1 // loop_header
      %s14 = sphi 0, %s18
      %p15 = scmp.ge.s32.totalorder %s14, 6
      %s22 = sphi 0, %s22
      %s24 = sphi 0, %s22
      %s25 = sphi 0, %s24
      %s39 = sphi 0, %s25
      %s43 = sphi 0, %s43
      %s45 = sphi 0, %s43
      %s46 = sphi 0, %s45
      %s60 = sphi 0, %s46
      %s64 = sphi 0, %s64
      %s66 = sphi 0, %s64
      %s67 = sphi 0, %s66
      %s81 = sphi 0, %s67
      %s85 = sphi 0, %s85
      %s87 = sphi 0, %s85
      %s88 = sphi 0, %s87
      %s102 = sphi 0, %s88
      %s106 = sphi 0, %s106
      %s108 = sphi 0, %s106
      %s109 = sphi 0, %s108
      %s123 = sphi 0, %s109
      %s129 = sphi 0, %s131
      %s132 = sphi 0, %s129
      %s133 = sphi 0, %s132
      %s149 = sphi 0, %s133
      %s155 = sphi 0, %s157
      %s158 = sphi 0, %s155
      %s159 = sphi 0, %s158
      %s175 = sphi 0, %s159
      %s181 = sphi 0, %s183
      %s184 = sphi 0, %s181
      %s185 = sphi 0, %s184
      %s201 = sphi 0, %s185
      %s205 = sphi 0, %s205
      %s207 = sphi 0, %s205
      %s208 = sphi 0, %s207
      %s222 = sphi 0, %s208
    $region4: #{perceiver_forward.1} parent=1 // loop_header_branch
      %17 = sbr.rel (%p15) target = $region8
    $region5: #{perceiver_forward.1} parent=1 // loop_body
      %s19 = ssub.s32 %s14, 1
      %s20 = ssub.s32 %s14, 2
      %s21 = sadd.s32 %s14, 1
      %s23 = sadd.s32 %s22, 1
      %p26 = scmp.eq.s32.totalorder %s14, 3
      %p27 = scmp.ne.s32.totalorder %s22, %s24
      %p28 = scmp.eq.s32.totalorder %s14, 0
      %p29 = por %p27, %p28
      %p30 = scmp.ne.s32.totalorder %s22, %s24
      %p31 = scmp.eq.s32.totalorder %s19, 3
      %p32 = por %p30, %p31
      %p33 = scmp.ne.s32.totalorder %s24, %s25
      %p34 = scmp.eq.s32.totalorder %s19, 0
      %p35 = por %p33, %p34
      %p36 = scmp.ne.s32.totalorder %s24, %s25
      %p37 = scmp.eq.s32.totalorder %s20, 3
      %p38 = por %p36, %p37
      %p40 = scmp.ne.s32.totalorder %s25, %s39
      %p41 = scmp.eq.s32.totalorder %s20, 0
      %p42 = por %p40, %p41
      %s44 = sadd.s32 %s43, 1
      %p47 = scmp.eq.s32.totalorder %s14, 3
      %p48 = scmp.ne.s32.totalorder %s43, %s45
      %p49 = scmp.eq.s32.totalorder %s14, 0
      %p50 = por %p48, %p49
      %p51 = scmp.ne.s32.totalorder %s43, %s45
      %p52 = scmp.eq.s32.totalorder %s19, 3
      %p53 = por %p51, %p52
      %p54 = scmp.ne.s32.totalorder %s45, %s46
      %p55 = scmp.eq.s32.totalorder %s19, 0
      %p56 = por %p54, %p55
      %p57 = scmp.ne.s32.totalorder %s45, %s46
      %p58 = scmp.eq.s32.totalorder %s20, 3
      %p59 = por %p57, %p58
      %p61 = scmp.ne.s32.totalorder %s46, %s60
      %p62 = scmp.eq.s32.totalorder %s20, 0
      %p63 = por %p61, %p62
      %s65 = sadd.s32 %s64, 1
      %p68 = scmp.eq.s32.totalorder %s14, 3
      %p69 = scmp.ne.s32.totalorder %s64, %s66
      %p70 = scmp.eq.s32.totalorder %s14, 0
      %p71 = por %p69, %p70
      %p72 = scmp.ne.s32.totalorder %s64, %s66
      %p73 = scmp.eq.s32.totalorder %s19, 3
      %p74 = por %p72, %p73
      %p75 = scmp.ne.s32.totalorder %s66, %s67
      %p76 = scmp.eq.s32.totalorder %s19, 0
      %p77 = por %p75, %p76
      %p78 = scmp.ne.s32.totalorder %s66, %s67
      %p79 = scmp.eq.s32.totalorder %s20, 3
      %p80 = por %p78, %p79
      %p82 = scmp.ne.s32.totalorder %s67, %s81
      %p83 = scmp.eq.s32.totalorder %s20, 0
      %p84 = por %p82, %p83
      %s86 = sadd.s32 %s85, 1
      %p89 = scmp.eq.s32.totalorder %s14, 3
      %p90 = scmp.ne.s32.totalorder %s85, %s87
      %p91 = scmp.eq.s32.totalorder %s14, 0
      %p92 = por %p90, %p91
      %p93 = scmp.ne.s32.totalorder %s85, %s87
      %p94 = scmp.eq.s32.totalorder %s19, 3
      %p95 = por %p93, %p94
      %p96 = scmp.ne.s32.totalorder %s87, %s88
      %p97 = scmp.eq.s32.totalorder %s19, 0
      %p98 = por %p96, %p97
      %p99 = scmp.ne.s32.totalorder %s87, %s88
      %p100 = scmp.eq.s32.totalorder %s20, 3
      %p101 = por %p99, %p100
      %p103 = scmp.ne.s32.totalorder %s88, %s102
      %p104 = scmp.eq.s32.totalorder %s20, 0
      %p105 = por %p103, %p104
      %s107 = sadd.s32 %s106, 1
      %p110 = scmp.eq.s32.totalorder %s14, 3
      %p111 = scmp.ne.s32.totalorder %s106, %s108
      %p112 = scmp.eq.s32.totalorder %s14, 0
      %p113 = por %p111, %p112
      %p114 = scmp.ne.s32.totalorder %s106, %s108
      %p115 = scmp.eq.s32.totalorder %s19, 3
      %p116 = por %p114, %p115
      %p117 = scmp.ne.s32.totalorder %s108, %s109
      %p118 = scmp.eq.s32.totalorder %s19, 0
      %p119 = por %p117, %p118
      %p120 = scmp.ne.s32.totalorder %s108, %s109
      %p121 = scmp.eq.s32.totalorder %s20, 3
      %p122 = por %p120, %p121
      %p124 = scmp.ne.s32.totalorder %s109, %s123
      %p125 = scmp.eq.s32.totalorder %s20, 0
      %p126 = por %p124, %p125
      %s127 = ssub.s32 %s14, %s21
      %p128 = scmp.eq.s32.totalorder %s127, 0
      %s130 = sadd.s32 %s129, 1
      %s131 = scalar_select %p128, %s129, %s130
      %p134 = pneg %p128
      %p135 = scmp.eq.s32.totalorder %s14, 3
      %p136 = por %p134, %p135
      %p137 = scmp.ne.s32.totalorder %s129, %s132
      %p138 = scmp.eq.s32.totalorder %s14, 0
      %p139 = por %p137, %p138
      %p140 = scmp.ne.s32.totalorder %s129, %s132
      %p141 = scmp.eq.s32.totalorder %s19, 3
      %p142 = por %p140, %p141
      %p143 = scmp.ne.s32.totalorder %s132, %s133
      %p144 = scmp.eq.s32.totalorder %s19, 0
      %p145 = por %p143, %p144
      %p146 = scmp.ne.s32.totalorder %s132, %s133
      %p147 = scmp.eq.s32.totalorder %s20, 3
      %p148 = por %p146, %p147
      %p150 = scmp.ne.s32.totalorder %s133, %s149
      %p151 = scmp.eq.s32.totalorder %s20, 0
      %p152 = por %p150, %p151
      %s153 = ssub.s32 %s14, %s21
      %p154 = scmp.eq.s32.totalorder %s153, 0
      %s156 = sadd.s32 %s155, 1
      %s157 = scalar_select %p154, %s155, %s156
      %p160 = pneg %p154
      %p161 = scmp.eq.s32.totalorder %s14, 3
      %p162 = por %p160, %p161
      %p163 = scmp.ne.s32.totalorder %s155, %s158
      %p164 = scmp.eq.s32.totalorder %s14, 0
      %p165 = por %p163, %p164
      %p166 = scmp.ne.s32.totalorder %s155, %s158
      %p167 = scmp.eq.s32.totalorder %s19, 3
      %p168 = por %p166, %p167
      %p169 = scmp.ne.s32.totalorder %s158, %s159
      %p170 = scmp.eq.s32.totalorder %s19, 0
      %p171 = por %p169, %p170
      %p172 = scmp.ne.s32.totalorder %s158, %s159
      %p173 = scmp.eq.s32.totalorder %s20, 3
      %p174 = por %p172, %p173
      %p176 = scmp.ne.s32.totalorder %s159, %s175
      %p177 = scmp.eq.s32.totalorder %s20, 0
      %p178 = por %p176, %p177
      %s179 = ssub.s32 %s14, %s21
      %p180 = scmp.eq.s32.totalorder %s179, 0
      %s182 = sadd.s32 %s181, 1
      %s183 = scalar_select %p180, %s181, %s182
      %p186 = pneg %p180
      %p187 = scmp.eq.s32.totalorder %s14, 3
      %p188 = por %p186, %p187
      %p189 = scmp.ne.s32.totalorder %s181, %s184
      %p190 = scmp.eq.s32.totalorder %s14, 0
      %p191 = por %p189, %p190
      %p192 = scmp.ne.s32.totalorder %s181, %s184
      %p193 = scmp.eq.s32.totalorder %s19, 3
      %p194 = por %p192, %p193
      %p195 = scmp.ne.s32.totalorder %s184, %s185
      %p196 = scmp.eq.s32.totalorder %s19, 0
      %p197 = por %p195, %p196
      %p198 = scmp.ne.s32.totalorder %s184, %s185
      %p199 = scmp.eq.s32.totalorder %s20, 3
      %p200 = por %p198, %p199
      %p202 = scmp.ne.s32.totalorder %s185, %s201
      %p203 = scmp.eq.s32.totalorder %s20, 0
      %p204 = por %p202, %p203
      %s206 = sadd.s32 %s205, 1
      %p209 = scmp.eq.s32.totalorder %s14, 3
      %p210 = scmp.ne.s32.totalorder %s205, %s207
      %p211 = scmp.eq.s32.totalorder %s14, 0
      %p212 = por %p210, %p211
      %p213 = scmp.ne.s32.totalorder %s205, %s207
      %p214 = scmp.eq.s32.totalorder %s19, 3
      %p215 = por %p213, %p214
      %p216 = scmp.ne.s32.totalorder %s207, %s208
      %p217 = scmp.eq.s32.totalorder %s19, 0
      %p218 = por %p216, %p217
      %p219 = scmp.ne.s32.totalorder %s207, %s208
      %p220 = scmp.eq.s32.totalorder %s20, 3
      %p221 = por %p219, %p220
      %p223 = scmp.ne.s32.totalorder %s208, %s222
      %p224 = scmp.eq.s32.totalorder %s20, 0
      %p225 = por %p223, %p224
      %p226 = scmp.le.s32.totalorder 1, %s14
      %p227 = scmp.lt.s32.totalorder %s14, 5
      %p228 = pnand %p226, %p227
      %p229 = pneg %p228
      // Predicated region
      $region9: #{perceiver_forward.1} parent=5 // pred_check
        _
      $region10: #{perceiver_forward.1} parent=5 // pred_check_branch
        %231 = sbr.rel (%p228) target = $region12
      $region11: #{perceiver_forward.1} parent=5 // pred_region
        %s232 = ssub.s32 %s14, 1
        // Predicated region
        $region13: #{perceiver_forward.1} parent=11 // pred_check
          %p233 = pneg %p35
        $region14: #{perceiver_forward.1} parent=11 // pred_check_branch
          %235 = sbr.rel (%p233) target = $region16
        $region15: #{perceiver_forward.1} parent=11 // pred_region
          _
        $region16: #{perceiver_forward.1} parent=11 // pred_fallthru
          _
        // Predicated region
        $region17: #{perceiver_forward.1} parent=11 // pred_check
          %p236 = pneg %p56
        $region18: #{perceiver_forward.1} parent=11 // pred_check_branch
          %238 = sbr.rel (%p236) target = $region20
        $region19: #{perceiver_forward.1} parent=11 // pred_region
          _
        $region20: #{perceiver_forward.1} parent=11 // pred_fallthru
          _
        // Predicated region
        $region21: #{perceiver_forward.1} parent=11 // pred_check
          %p239 = pneg %p77
        $region22: #{perceiver_forward.1} parent=11 // pred_check_branch
          %241 = sbr.rel (%p239) target = $region24
        $region23: #{perceiver_forward.1} parent=11 // pred_region
          _
        $region24: #{perceiver_forward.1} parent=11 // pred_fallthru
          _
        // Predicated region
        $region25: #{perceiver_forward.1} parent=11 // pred_check
          %p242 = pneg %p98
        $region26: #{perceiver_forward.1} parent=11 // pred_check_branch
          %244 = sbr.rel (%p242) target = $region28
        $region27: #{perceiver_forward.1} parent=11 // pred_region
          _
        $region28: #{perceiver_forward.1} parent=11 // pred_fallthru
          _
        // Predicated region
        $region29: #{perceiver_forward.1} parent=11 // pred_check
          %p245 = pneg %p119
        $region30: #{perceiver_forward.1} parent=11 // pred_check_branch
          %247 = sbr.rel (%p245) target = $region32
        $region31: #{perceiver_forward.1} parent=11 // pred_region
          _
        $region32: #{perceiver_forward.1} parent=11 // pred_fallthru
          _
      $region12: #{perceiver_forward.1} parent=5 // pred_fallthru
        _
      %p248 = scmp.lt.s32.totalorder %s14, 4
      // Predicated region
      $region33: #{perceiver_forward.1} parent=5 // pred_check
        %p249 = pneg %p248
      $region34: #{perceiver_forward.1} parent=5 // pred_check_branch
        %251 = sbr.rel (%p249) target = $region36
      $region35: #{perceiver_forward.1} parent=5 // pred_region
        // Predicated region
        $region37: #{perceiver_forward.1} parent=35 // pred_check
          %p252 = pneg %p139
        $region38: #{perceiver_forward.1} parent=35 // pred_check_branch
          %254 = sbr.rel (%p252) target = $region40
        $region39: #{perceiver_forward.1} parent=35 // pred_region
          %s255 = sand.u32 %s129, 1
          %s256 = sand.u32 %s129, 1
          %s257 = smul.addr %s256, 128
          %s258 = scalar_lea.vmem [#allocation4], %s257
          %s259 = smul.u32 4, %s14
          %s260 = smul.addr %s259, 4
          %s261 = scalar_lea.vmem %s5, %s260
          // Predicated region
          $region41: #{perceiver_forward.1} parent=39 // pred_check
            _
          $region42: #{perceiver_forward.1} parent=39 // pred_check_branch
            %263 = sbr.rel (0) target = $region44
          $region43: #{perceiver_forward.1} parent=39 // pred_region
            // Predicated region
            $region45: #{perceiver_forward.1} parent=43 // pred_check
              _
            $region46: #{perceiver_forward.1} parent=43 // pred_check_branch
              %265 = sbr.rel (0) target = $region48
            $region47: #{perceiver_forward.1} parent=43 // pred_region
              loop: start=0, step=1, limit=1
              $region49: #{perceiver_forward.1} parent=47 // loop_pre_header
                _
              $region50: #{perceiver_forward.1} parent=47 // loop_header
                %s267 = sphi 0, %s271
                %p268 = scmp.ge.s32.totalorder %s267, 1
                %s272 = sphi %s261, %s261
                %s273 = sphi %s258, %s258
              $region51: #{perceiver_forward.1} parent=47 // loop_header_branch
                %270 = sbr.rel (%p268) target = $region55
              $region52: #{perceiver_forward.1} parent=47 // loop_body
                %v274 = vld [vmem:[%s272] sm:$0xff]
                %275 = vst [vmem:[%s273] sm:$0xff] %v274
                %v276 = vld [vmem:[%s272 + $0x8] sm:$0xff]
                %277 = vst [vmem:[%s273 + $0x8] sm:$0xff] %v276
                %v278 = vld [vmem:[%s272 + $0x40] sm:$0xff]
                %279 = vst [vmem:[%s273 + $0x10] sm:$0xff] %v278
                %v280 = vld [vmem:[%s272 + $0x48] sm:$0xff]
                %281 = vst [vmem:[%s273 + $0x18] sm:$0xff] %v280
                %v282 = vld [vmem:[%s272 + $0x80] sm:$0xff]
                %283 = vst [vmem:[%s273 + $0x20] sm:$0xff] %v282
                %v284 = vld [vmem:[%s272 + $0x88] sm:$0xff]
                %285 = vst [vmem:[%s273 + $0x28] sm:$0xff] %v284
                %v286 = vld [vmem:[%s272 + $0xc0] sm:$0xff]
                %287 = vst [vmem:[%s273 + $0x30] sm:$0xff] %v286
                %v288 = vld [vmem:[%s272 + $0xc8] sm:$0xff]
                %289 = vst [vmem:[%s273 + $0x38] sm:$0xff] %v288
                %v290 = vld [vmem:[%s272 + $0x100] sm:$0xff]
                %291 = vst [vmem:[%s273 + $0x40] sm:$0xff] %v290
                %v292 = vld [vmem:[%s272 + $0x108] sm:$0xff]
                %293 = vst [vmem:[%s273 + $0x48] sm:$0xff] %v292
                %v294 = vld [vmem:[%s272 + $0x140] sm:$0xff]
                %295 = vst [vmem:[%s273 + $0x50] sm:$0xff] %v294
                %v296 = vld [vmem:[%s272 + $0x148] sm:$0xff]
                %297 = vst [vmem:[%s273 + $0x58] sm:$0xff] %v296
                %v298 = vld [vmem:[%s272 + $0x180] sm:$0xff]
                %299 = vst [vmem:[%s273 + $0x60] sm:$0xff] %v298
                %v300 = vld [vmem:[%s272 + $0x188] sm:$0xff]
                %301 = vst [vmem:[%s273 + $0x68] sm:$0xff] %v300
                %v302 = vld [vmem:[%s272 + $0x1c0] sm:$0xff]
                %303 = vst [vmem:[%s273 + $0x70] sm:$0xff] %v302
                %v304 = vld [vmem:[%s272 + $0x1c8] sm:$0xff]
                %305 = vst [vmem:[%s273 + $0x78] sm:$0xff] %v304
              $region53: #{perceiver_forward.1} parent=47 // loop_footer
                %s271 = sadd.s32 1, %s267
              $region54: #{perceiver_forward.1} parent=47 // loop_footer_branch
                %266 = sbr.rel target = $region50
              $region55: #{perceiver_forward.1} parent=47 // loop_exit
                _
            $region48: #{perceiver_forward.1} parent=43 // pred_fallthru
              _
            // Predicated region
            $region56: #{perceiver_forward.1} parent=43 // pred_check
              _
            $region57: #{perceiver_forward.1} parent=43 // pred_check_branch
              %307 = sbr.rel target = $region59
            $region58: #{perceiver_forward.1} parent=43 // pred_region
              _
            $region59: #{perceiver_forward.1} parent=43 // pred_fallthru
              _
          $region44: #{perceiver_forward.1} parent=39 // pred_fallthru
            _
          %308 = vnop
        $region40: #{perceiver_forward.1} parent=35 // pred_fallthru
          _
        // Predicated region
        $region60: #{perceiver_forward.1} parent=35 // pred_check
          %p309 = pneg %p165
        $region61: #{perceiver_forward.1} parent=35 // pred_check_branch
          %311 = sbr.rel (%p309) target = $region63
        $region62: #{perceiver_forward.1} parent=35 // pred_region
          %s312 = smul.u32 4, %s14
          %p313 = scmp.lt.s32.totalorder %s312, 15
          %s314 = scalar_select %p313, %s312, 15
          %s315 = scalar_lea.vmem %s6, %s314
          %s316 = smul.u32 4, %s14
        $region63: #{perceiver_forward.1} parent=35 // pred_fallthru
          _
        // Predicated region
        $region64: #{perceiver_forward.1} parent=35 // pred_check
          %p317 = pneg %p191
        $region65: #{perceiver_forward.1} parent=35 // pred_check_branch
          %319 = sbr.rel (%p317) target = $region67
        $region66: #{perceiver_forward.1} parent=35 // pred_region
          %s320 = smul.u32 64, %s14
          %p321 = scmp.lt.s32.totalorder %s320, 255
          %s322 = scalar_select %p321, %s320, 255
          %s323 = smul.addr %s322, 4
          %s324 = scalar_lea.vmem %s7, %s323
          %s325 = smul.u32 64, %s14
        $region67: #{perceiver_forward.1} parent=35 // pred_fallthru
          _
      $region36: #{perceiver_forward.1} parent=5 // pred_fallthru
        _
      %p326 = scmp.le.s32.totalorder 1, %s14
      %p327 = scmp.lt.s32.totalorder %s14, 5
      %p328 = pnand %p326, %p327
      %p329 = pneg %p328
      // Predicated region
      $region68: #{perceiver_forward.1} parent=5 // pred_check
        _
      $region69: #{perceiver_forward.1} parent=5 // pred_check_branch
        %331 = sbr.rel (%p328) target = $region71
      $region70: #{perceiver_forward.1} parent=5 // pred_region
        %s332 = ssub.s32 %s14, 1
        %s333 = sand.u32 %s132, 1
        %s334 = sand.u32 %s132, 1
        %s335 = smul.addr %s334, 128
        %s336 = scalar_lea.vmem [#allocation4], %s335
        // Predicated region
        $region72: #{perceiver_forward.1} parent=70 // pred_check
          %p337 = pneg %p145
        $region73: #{perceiver_forward.1} parent=70 // pred_check_branch
          %339 = sbr.rel (%p337) target = $region75
        $region74: #{perceiver_forward.1} parent=70 // pred_region
          _
        $region75: #{perceiver_forward.1} parent=70 // pred_fallthru
          _
        %p340 = pneg %p35
        %p341 = pneg %p32
        %p342 = pneg %p56
        %p343 = pneg %p53
        %p344 = pneg %p77
        %p345 = pneg %p74
        %p346 = pneg %p98
        %p347 = pneg %p95
        %p348 = pneg %p119
        %p349 = pneg %p116
        %s350 = sand.u32 %s132, 1
        %s351 = sand.u32 %s132, 1
        %s352 = smul.addr %s351, 128
        %s353 = scalar_lea.vmem [#allocation4], %s352
        %p354 = pneg %p145
        %p355 = pneg %p142
        %s356 = smul.u32 4, %s19
        %p357 = scmp.lt.s32.totalorder %s356, 15
        %s358 = scalar_select %p357, %s356, 15
        %s359 = scalar_lea.vmem %s6, %s358
        %p360 = pneg %p171
        %p361 = pneg %p168
        %s362 = smul.u32 64, %s19
        %p363 = scmp.lt.s32.totalorder %s362, 255
        %s364 = scalar_select %p363, %s362, 255
        %s365 = smul.addr %s364, 4
        %s366 = scalar_lea.vmem %s7, %s365
        %p367 = pneg %p197
        %p368 = pneg %p194
        %p369 = pneg %p218
        %p370 = pneg %p215
        %s371 = smul.u32 4, %s19
        %s372 = smul.u32 4, %s19
        %p373 = scmp.lt.s32.totalorder %s372, 15
        %s374 = scalar_select %p373, %s372, 15
        %s375 = scalar_lea.vmem %s6, %s374
        %s376 = smul.u32 4, %s19
        %s377 = smul.u32 64, %s19
        %p378 = scmp.lt.s32.totalorder %s377, 255
        %s379 = scalar_select %p378, %s377, 255
        %s380 = smul.addr %s379, 4
        %s381 = scalar_lea.vmem %s7, %s380
        %s382 = smul.u32 64, %s19
        %p384 = scmp.eq.s32.totalorder %s19, 0
        // Predicated region
        $region76: #{perceiver_forward.1} parent=70 // pred_check
          %p385 = pneg %p384
        $region77: #{perceiver_forward.1} parent=70 // pred_check_branch
          %387 = sbr.rel (%p385) target = $region79
        $region78: #{perceiver_forward.1} parent=70 // pred_region
          %v388 = vld [vmem:[%s0] sm:$0xff]
          %v389 = vld [vmem:[%s0 + $0x8] sm:$0xff]
          %v390 = vpack.c.bf16 %v388, %v388
          %v391 = vpack.c.bf16 %v389, %v389
          %v392 = vld [vmem:[%s2] sm:$0xf]
          %v393 = vld [vmem:[%s2 + $0x4] sm:$0xf]
          %v394 = vld [vmem:[%s2 + $0x8] sm:$0xf]
          %v395 = vld [vmem:[%s2 + $0xc] sm:$0xf]
          %v396 = vld [vmem:[%s2 + $0x10] sm:$0xf]
          %v397 = vld [vmem:[%s2 + $0x14] sm:$0xf]
          %v398 = vld [vmem:[%s2 + $0x18] sm:$0xf]
          %v399 = vld [vmem:[%s2 + $0x1c] sm:$0xf]
          %v408 = vunpack.c.l.b16 %v392
          %v409 = vunpack.c.l.b16 %v393
          %v410 = vunpack.c.l.b16 %v394
          %v411 = vunpack.c.l.b16 %v395
          %v412 = vunpack.c.l.b16 %v396
          %v413 = vunpack.c.l.b16 %v397
          %v414 = vunpack.c.l.b16 %v398
          %v415 = vunpack.c.l.b16 %v399
          %v416 = vpack.c.b16 %v409, %v408
          %v417 = vpack.c.b16 %v411, %v410
          %v418 = vpack.c.b16 %v413, %v412
          %v419 = vpack.c.b16 %v415, %v414
          %vm420 = vcmask 523264
          %v422 = vsel %vm420, %v416, 0
          %v425 = vsel %vm420, %v417, 0
          %v428 = vsel %vm420, %v418, 0
          %v431 = vsel %vm420, %v419, 0
          %v434 = vsel %vm420, %v390, 0
          %436 = vmatpush.bf16.xpose.msra.mxu0 0
          %437 = vmatpush.bf16.xpose.msra.mxu0 0
          %438 = vmatpush.bf16.xpose.msra.mxu0 0
          %439 = vmatpush.bf16.xpose.msra.mxu0 0
          %440 = vmatpush.bf16.xpose.msra.mxu0 0
          %441 = vmatpush.bf16.xpose.msra.mxu0 0
          %442 = vmatpush.bf16.xpose.msra.mxu0 0
          %443 = vmatpush.bf16.xpose.msra.mxu0 %v434
          %444 = vmatmul.bf16.gmra.mxu0 %v422
          %v445 = vpop.f32.mrf.mxu0
          %v446 = vadd.f32 0.0, %v445
          %v447 = vpop.f32.mrf.mxu0
          %v448 = vadd.f32 0.0, %v447
          %449 = vmatmul.bf16.gmra.mxu0 %v425
          %v450 = vpop.f32.mrf.mxu0
          %v451 = vadd.f32 0.0, %v450
          %v452 = vpop.f32.mrf.mxu0
          %v453 = vadd.f32 0.0, %v452
          %454 = vmatmul.bf16.gmra.mxu0 %v428
          %v455 = vpop.f32.mrf.mxu0
          %v456 = vadd.f32 0.0, %v455
          %v457 = vpop.f32.mrf.mxu0
          %v458 = vadd.f32 0.0, %v457
          %459 = vmatmul.bf16.gmra.mxu0 %v431
          %v460 = vpop.f32.mrf.mxu0
          %v461 = vadd.f32 0.0, %v460
          %v462 = vpop.f32.mrf.mxu0
          %v463 = vadd.f32 0.0, %v462
          %464 = vdwg.mxu0
          %v466 = vsel %vm420, %v391, 0
          %468 = vmatpush.bf16.xpose.msra.mxu0 0
          %469 = vmatpush.bf16.xpose.msra.mxu0 0
          %470 = vmatpush.bf16.xpose.msra.mxu0 0
          %471 = vmatpush.bf16.xpose.msra.mxu0 0
          %472 = vmatpush.bf16.xpose.msra.mxu0 0
          %473 = vmatpush.bf16.xpose.msra.mxu0 0
          %474 = vmatpush.bf16.xpose.msra.mxu0 0
          %475 = vmatpush.bf16.xpose.msra.mxu0 %v466
          %476 = vmatmul.bf16.gmra.mxu0 %v422
          %v477 = vpop.f32.mrf.mxu0
          %v478 = vadd.f32 0.0, %v477
          %v479 = vpop.f32.mrf.mxu0
          %v480 = vadd.f32 0.0, %v479
          %481 = vmatmul.bf16.gmra.mxu0 %v425
          %v482 = vpop.f32.mrf.mxu0
          %v483 = vadd.f32 0.0, %v482
          %v484 = vpop.f32.mrf.mxu0
          %v485 = vadd.f32 0.0, %v484
          %486 = vmatmul.bf16.gmra.mxu0 %v428
          %v487 = vpop.f32.mrf.mxu0
          %v488 = vadd.f32 0.0, %v487
          %v489 = vpop.f32.mrf.mxu0
          %v490 = vadd.f32 0.0, %v489
          %491 = vmatmul.bf16.gmra.mxu0 %v431
          %v492 = vpop.f32.mrf.mxu0
          %v493 = vadd.f32 0.0, %v492
          %v494 = vpop.f32.mrf.mxu0
          %v495 = vadd.f32 0.0, %v494
          %496 = vdwg.mxu0
          %vm497 = vcmask 64512
          %v498 = vsel %vm497, %v446, -inf
          %499 = vmax.xlane.f32.xlu0 %v498
          %v500 = vpop.xlane.xlu0 %499
          %v501 = vsel %vm497, %v448, -inf
          %502 = vmax.xlane.f32.xlu0 %v501
          %v503 = vpop.xlane.xlu0 %502
          %v504 = vsel %vm497, %v451, -inf
          %505 = vmax.xlane.f32.xlu0 %v504
          %v506 = vpop.xlane.xlu0 %505
          %v507 = vsel %vm497, %v453, -inf
          %508 = vmax.xlane.f32.xlu0 %v507
          %v509 = vpop.xlane.xlu0 %508
          %v510 = vsel %vm497, %v456, -inf
          %511 = vmax.xlane.f32.xlu0 %v510
          %v512 = vpop.xlane.xlu0 %511
          %v513 = vsel %vm497, %v458, -inf
          %514 = vmax.xlane.f32.xlu0 %v513
          %v515 = vpop.xlane.xlu0 %514
          %v516 = vsel %vm497, %v461, -inf
          %517 = vmax.xlane.f32.xlu0 %v516
          %v518 = vpop.xlane.xlu0 %517
          %v519 = vsel %vm497, %v463, -inf
          %520 = vmax.xlane.f32.xlu0 %v519
          %v521 = vpop.xlane.xlu0 %520
          %v522 = vsel %vm497, %v478, -inf
          %523 = vmax.xlane.f32.xlu0 %v522
          %v524 = vpop.xlane.xlu0 %523
          %v525 = vsel %vm497, %v480, -inf
          %526 = vmax.xlane.f32.xlu0 %v525
          %v527 = vpop.xlane.xlu0 %526
          %v528 = vsel %vm497, %v483, -inf
          %529 = vmax.xlane.f32.xlu0 %v528
          %v530 = vpop.xlane.xlu0 %529
          %v531 = vsel %vm497, %v485, -inf
          %532 = vmax.xlane.f32.xlu0 %v531
          %v533 = vpop.xlane.xlu0 %532
          %v534 = vsel %vm497, %v488, -inf
          %535 = vmax.xlane.f32.xlu0 %v534
          %v536 = vpop.xlane.xlu0 %535
          %v537 = vsel %vm497, %v490, -inf
          %538 = vmax.xlane.f32.xlu0 %v537
          %v539 = vpop.xlane.xlu0 %538
          %v540 = vsel %vm497, %v493, -inf
          %541 = vmax.xlane.f32.xlu0 %v540
          %v542 = vpop.xlane.xlu0 %541
          %v543 = vsel %vm497, %v495, -inf
          %544 = vmax.xlane.f32.xlu0 %v543
          %v545 = vpop.xlane.xlu0 %544
          %v546 = vsub.f32 %v446, %v500
          %v547 = vsub.f32 %v448, %v503
          %v548 = vsub.f32 %v451, %v506
          %v549 = vsub.f32 %v453, %v509
          %v550 = vsub.f32 %v456, %v512
          %v551 = vsub.f32 %v458, %v515
          %v552 = vsub.f32 %v461, %v518
          %v553 = vsub.f32 %v463, %v521
          %v554 = vsub.f32 %v478, %v524
          %v555 = vsub.f32 %v480, %v527
          %v556 = vsub.f32 %v483, %v530
          %v557 = vsub.f32 %v485, %v533
          %v558 = vsub.f32 %v488, %v536
          %v559 = vsub.f32 %v490, %v539
          %v560 = vsub.f32 %v493, %v542
          %v561 = vsub.f32 %v495, %v545
          %v562 = vmul.f32 %v546, 1.442695
          %v563 = vpow.pop %v562
          %v564 = vmul.f32 %v547, 1.442695
          %v565 = vpow.pop %v564
          %v566 = vmul.f32 %v548, 1.442695
          %v567 = vpow.pop %v566
          %v568 = vmul.f32 %v549, 1.442695
          %v569 = vpow.pop %v568
          %v570 = vmul.f32 %v550, 1.442695
          %v571 = vpow.pop %v570
          %v572 = vmul.f32 %v551, 1.442695
          %v573 = vpow.pop %v572
          %v574 = vmul.f32 %v552, 1.442695
          %v575 = vpow.pop %v574
          %v576 = vmul.f32 %v553, 1.442695
          %v577 = vpow.pop %v576
          %v578 = vmul.f32 %v554, 1.442695
          %v579 = vpow.pop %v578
          %v580 = vmul.f32 %v555, 1.442695
          %v581 = vpow.pop %v580
          %v582 = vmul.f32 %v556, 1.442695
          %v583 = vpow.pop %v582
          %v584 = vmul.f32 %v557, 1.442695
          %v585 = vpow.pop %v584
          %v586 = vmul.f32 %v558, 1.442695
          %v587 = vpow.pop %v586
          %v588 = vmul.f32 %v559, 1.442695
          %v589 = vpow.pop %v588
          %v590 = vmul.f32 %v560, 1.442695
          %v591 = vpow.pop %v590
          %v592 = vmul.f32 %v561, 1.442695
          %v593 = vpow.pop %v592
          %v594 = vsel %vm497, %v563, 0.0
          %595 = vadd.xlane.f32.xlu0 %v594
          %v596 = vpop.xlane.xlu0 %595
          %v597 = vsel %vm497, %v565, 0.0
          %598 = vadd.xlane.f32.xlu0 %v597
          %v599 = vpop.xlane.xlu0 %598
          %v600 = vsel %vm497, %v567, 0.0
          %601 = vadd.xlane.f32.xlu0 %v600
          %v602 = vpop.xlane.xlu0 %601
          %v603 = vsel %vm497, %v569, 0.0
          %604 = vadd.xlane.f32.xlu0 %v603
          %v605 = vpop.xlane.xlu0 %604
          %v606 = vsel %vm497, %v571, 0.0
          %607 = vadd.xlane.f32.xlu0 %v606
          %v608 = vpop.xlane.xlu0 %607
          %v609 = vsel %vm497, %v573, 0.0
          %610 = vadd.xlane.f32.xlu0 %v609
          %v611 = vpop.xlane.xlu0 %610
          %v612 = vsel %vm497, %v575, 0.0
          %613 = vadd.xlane.f32.xlu0 %v612
          %v614 = vpop.xlane.xlu0 %613
          %v615 = vsel %vm497, %v577, 0.0
          %616 = vadd.xlane.f32.xlu0 %v615
          %v617 = vpop.xlane.xlu0 %616
          %v618 = vsel %vm497, %v579, 0.0
          %619 = vadd.xlane.f32.xlu0 %v618
          %v620 = vpop.xlane.xlu0 %619
          %v621 = vsel %vm497, %v581, 0.0
          %622 = vadd.xlane.f32.xlu0 %v621
          %v623 = vpop.xlane.xlu0 %622
          %v624 = vsel %vm497, %v583, 0.0
          %625 = vadd.xlane.f32.xlu0 %v624
          %v626 = vpop.xlane.xlu0 %625
          %v627 = vsel %vm497, %v585, 0.0
          %628 = vadd.xlane.f32.xlu0 %v627
          %v629 = vpop.xlane.xlu0 %628
          %v630 = vsel %vm497, %v587, 0.0
          %631 = vadd.xlane.f32.xlu0 %v630
          %v632 = vpop.xlane.xlu0 %631
          %v633 = vsel %vm497, %v589, 0.0
          %634 = vadd.xlane.f32.xlu0 %v633
          %v635 = vpop.xlane.xlu0 %634
          %v636 = vsel %vm497, %v591, 0.0
          %637 = vadd.xlane.f32.xlu0 %v636
          %v638 = vpop.xlane.xlu0 %637
          %v639 = vsel %vm497, %v593, 0.0
          %640 = vadd.xlane.f32.xlu0 %v639
          %v641 = vpop.xlane.xlu0 %640
          %v642 = vrcp.pop %v596
          %v643 = vrcp.pop %v599
          %v644 = vrcp.pop %v602
          %v645 = vrcp.pop %v605
          %v646 = vrcp.pop %v608
          %v647 = vrcp.pop %v611
          %v648 = vrcp.pop %v614
          %v649 = vrcp.pop %v617
          %v650 = vrcp.pop %v620
          %v651 = vrcp.pop %v623
          %v652 = vrcp.pop %v626
          %v653 = vrcp.pop %v629
          %v654 = vrcp.pop %v632
          %v655 = vrcp.pop %v635
          %v656 = vrcp.pop %v638
          %v657 = vrcp.pop %v641
          %v658 = vmul.f32 %v563, %v642
          %v659 = vmul.f32 %v565, %v643
          %v660 = vmul.f32 %v567, %v644
          %v661 = vmul.f32 %v569, %v645
          %v662 = vmul.f32 %v571, %v646
          %v663 = vmul.f32 %v573, %v647
          %v664 = vmul.f32 %v575, %v648
          %v665 = vmul.f32 %v577, %v649
          %v666 = vmul.f32 %v579, %v650
          %v667 = vmul.f32 %v581, %v651
          %v668 = vmul.f32 %v583, %v652
          %v669 = vmul.f32 %v585, %v653
          %v670 = vmul.f32 %v587, %v654
          %v671 = vmul.f32 %v589, %v655
          %v672 = vmul.f32 %v591, %v656
          %v673 = vmul.f32 %v593, %v657
          %v674 = vpack.c.bf16 %v658, %v658
          %v675 = vpack.c.bf16 %v659, %v659
          %v676 = vpack.c.bf16 %v660, %v660
          %v677 = vpack.c.bf16 %v661, %v661
          %v678 = vpack.c.bf16 %v662, %v662
          %v679 = vpack.c.bf16 %v663, %v663
          %v680 = vpack.c.bf16 %v664, %v664
          %v681 = vpack.c.bf16 %v665, %v665
          %v682 = vpack.c.bf16 %v666, %v666
          %v683 = vpack.c.bf16 %v667, %v667
          %v684 = vpack.c.bf16 %v668, %v668
          %v685 = vpack.c.bf16 %v669, %v669
          %v686 = vpack.c.bf16 %v670, %v670
          %v687 = vpack.c.bf16 %v671, %v671
          %v688 = vpack.c.bf16 %v672, %v672
          %v689 = vpack.c.bf16 %v673, %v673
          %v698 = vunpack.c.l.b16 %v674
          %v699 = vunpack.c.l.b16 %v675
          %v700 = vunpack.c.l.b16 %v676
          %v701 = vunpack.c.l.b16 %v677
          %v702 = vunpack.c.l.b16 %v678
          %v703 = vunpack.c.l.b16 %v679
          %v704 = vunpack.c.l.b16 %v680
          %v705 = vunpack.c.l.b16 %v681
          %v706 = vpack.c.b16 %v699, %v698
          %v707 = vpack.c.b16 %v701, %v700
          %v708 = vpack.c.b16 %v703, %v702
          %v709 = vpack.c.b16 %v705, %v704
          %v711 = vsel %vm497, %v706, 0
          %v714 = vsel %vm497, %v707, 0
          %v717 = vsel %vm497, %v708, 0
          %v720 = vsel %vm497, %v709, 0
          %vm722 = vcmask 1043456
          %v723 = vsel %vm722, %v390, 0
          %725 = vmatpush.bf16.msra.mxu0 0
          %726 = vmatpush.bf16.msra.mxu0 0
          %727 = vmatpush.bf16.msra.mxu0 0
          %728 = vmatpush.bf16.msra.mxu0 0
          %729 = vmatpush.bf16.msra.mxu0 0
          %730 = vmatpush.bf16.msra.mxu0 0
          %731 = vmatpush.bf16.msra.mxu0 0
          %732 = vmatpush.bf16.msra.mxu0 %v723
          %733 = vmatmul.bf16.gmra.mxu0 %v711
          %v734 = vpop.f32.mrf.mxu0
          %v735 = vadd.f32 0.0, %v734
          %v736 = vpop.f32.mrf.mxu0
          %v737 = vadd.f32 0.0, %v736
          %738 = vmatmul.bf16.gmra.mxu0 %v714
          %v739 = vpop.f32.mrf.mxu0
          %v740 = vadd.f32 0.0, %v739
          %v741 = vpop.f32.mrf.mxu0
          %v742 = vadd.f32 0.0, %v741
          %743 = vmatmul.bf16.gmra.mxu0 %v717
          %v744 = vpop.f32.mrf.mxu0
          %v745 = vadd.f32 0.0, %v744
          %v746 = vpop.f32.mrf.mxu0
          %v747 = vadd.f32 0.0, %v746
          %748 = vmatmul.bf16.gmra.mxu0 %v720
          %v749 = vpop.f32.mrf.mxu0
          %v750 = vadd.f32 0.0, %v749
          %v751 = vpop.f32.mrf.mxu0
          %v752 = vadd.f32 0.0, %v751
          %753 = vdwg.mxu0
          %v762 = vunpack.c.l.b16 %v682
          %v763 = vunpack.c.l.b16 %v683
          %v764 = vunpack.c.l.b16 %v684
          %v765 = vunpack.c.l.b16 %v685
          %v766 = vunpack.c.l.b16 %v686
          %v767 = vunpack.c.l.b16 %v687
          %v768 = vunpack.c.l.b16 %v688
          %v769 = vunpack.c.l.b16 %v689
          %v770 = vpack.c.b16 %v763, %v762
          %v771 = vpack.c.b16 %v765, %v764
          %v772 = vpack.c.b16 %v767, %v766
          %v773 = vpack.c.b16 %v769, %v768
          %v775 = vsel %vm497, %v770, 0
          %v778 = vsel %vm497, %v771, 0
          %v781 = vsel %vm497, %v772, 0
          %v784 = vsel %vm497, %v773, 0
          %v786 = vsel %vm722, %v391, 0
          %788 = vmatpush.bf16.msra.mxu0 0
          %789 = vmatpush.bf16.msra.mxu0 0
          %790 = vmatpush.bf16.msra.mxu0 0
          %791 = vmatpush.bf16.msra.mxu0 0
          %792 = vmatpush.bf16.msra.mxu0 0
          %793 = vmatpush.bf16.msra.mxu0 0
          %794 = vmatpush.bf16.msra.mxu0 0
          %795 = vmatpush.bf16.msra.mxu0 %v786
          %796 = vmatmul.bf16.gmra.mxu0 %v775
          %v797 = vpop.f32.mrf.mxu0
          %v798 = vadd.f32 0.0, %v797
          %v799 = vpop.f32.mrf.mxu0
          %v800 = vadd.f32 0.0, %v799
          %801 = vmatmul.bf16.gmra.mxu0 %v778
          %v802 = vpop.f32.mrf.mxu0
          %v803 = vadd.f32 0.0, %v802
          %v804 = vpop.f32.mrf.mxu0
          %v805 = vadd.f32 0.0, %v804
          %806 = vmatmul.bf16.gmra.mxu0 %v781
          %v807 = vpop.f32.mrf.mxu0
          %v808 = vadd.f32 0.0, %v807
          %v809 = vpop.f32.mrf.mxu0
          %v810 = vadd.f32 0.0, %v809
          %811 = vmatmul.bf16.gmra.mxu0 %v784
          %v812 = vpop.f32.mrf.mxu0
          %v813 = vadd.f32 0.0, %v812
          %v814 = vpop.f32.mrf.mxu0
          %v815 = vadd.f32 0.0, %v814
          %816 = vdwg.mxu0
          %v817 = vpack.c.bf16 %v735, %v735
          %v818 = vpack.c.bf16 %v737, %v737
          %v819 = vpack.c.bf16 %v740, %v740
          %v820 = vpack.c.bf16 %v742, %v742
          %v821 = vpack.c.bf16 %v745, %v745
          %v822 = vpack.c.bf16 %v747, %v747
          %v823 = vpack.c.bf16 %v750, %v750
          %v824 = vpack.c.bf16 %v752, %v752
          %v825 = vpack.c.bf16 %v798, %v798
          %v826 = vpack.c.bf16 %v800, %v800
          %v827 = vpack.c.bf16 %v803, %v803
          %v828 = vpack.c.bf16 %v805, %v805
          %v829 = vpack.c.bf16 %v808, %v808
          %v830 = vpack.c.bf16 %v810, %v810
          %v831 = vpack.c.bf16 %v813, %v813
          %v832 = vpack.c.bf16 %v815, %v815
          %v833 = vld [vmem:[%s3] sm:$0xf]
          %v834 = vld [vmem:[%s3 + $0x4] sm:$0xf]
          %v835 = vld [vmem:[%s3 + $0x8] sm:$0xf]
          %v836 = vld [vmem:[%s3 + $0xc] sm:$0xf]
          %v837 = vld [vmem:[%s3 + $0x10] sm:$0xf]
          %v838 = vld [vmem:[%s3 + $0x14] sm:$0xf]
          %v839 = vld [vmem:[%s3 + $0x18] sm:$0xf]
          %v840 = vld [vmem:[%s3 + $0x1c] sm:$0xf]
          %s841 = scalar_lea.vmem %s3, 32
          %v842 = vld [vmem:[%s841] sm:$0xf]
          %v843 = vld [vmem:[%s841 + $0x4] sm:$0xf]
          %v844 = vld [vmem:[%s841 + $0x8] sm:$0xf]
          %v845 = vld [vmem:[%s841 + $0xc] sm:$0xf]
          %v846 = vld [vmem:[%s841 + $0x10] sm:$0xf]
          %v847 = vld [vmem:[%s841 + $0x14] sm:$0xf]
          %v848 = vld [vmem:[%s841 + $0x18] sm:$0xf]
          %v849 = vld [vmem:[%s841 + $0x1c] sm:$0xf]
          %v854 = vunpack.c.l.b16 %v819
          %v855 = vunpack.c.l.b16 %v820
          %v856 = vunpack.c.l.b16 %v827
          %v857 = vunpack.c.l.b16 %v828
          %v858 = vpack.c.b16 %v855, %v854
          %v859 = vpack.c.b16 %v857, %v856
          %v868 = vunpack.c.l.b16 %v842
          %v869 = vunpack.c.l.b16 %v843
          %v870 = vunpack.c.l.b16 %v844
          %v871 = vunpack.c.l.b16 %v845
          %v872 = vunpack.c.l.b16 %v846
          %v873 = vunpack.c.l.b16 %v847
          %v874 = vunpack.c.l.b16 %v848
          %v875 = vunpack.c.l.b16 %v849
          %v876 = vpack.c.b16 %v869, %v868
          %v877 = vpack.c.b16 %v871, %v870
          %v878 = vpack.c.b16 %v873, %v872
          %v879 = vpack.c.b16 %v875, %v874
          %v885 = vsel %vm420, %v858, 0
          %v888 = vsel %vm420, %v859, 0
          %890 = vmatpush.bf16.msra.mxu0 0
          %891 = vmatpush.bf16.msra.mxu0 0
          %892 = vmatpush.bf16.msra.mxu0 0
          %893 = vmatpush.bf16.msra.mxu0 0
          %894 = vmatpush.bf16.msra.mxu0 %v879
          %895 = vmatpush.bf16.msra.mxu0 %v878
          %896 = vmatpush.bf16.msra.mxu0 %v877
          %897 = vmatpush.bf16.msra.mxu0 %v876
          %898 = vmatmul.bf16.gmra.mxu0 %v885
          %v899 = vpop.f32.mrf.mxu0
          %v900 = vadd.f32 0.0, %v899
          %v901 = vpop.f32.mrf.mxu0
          %v902 = vadd.f32 0.0, %v901
          %903 = vmatmul.bf16.gmra.mxu0 %v888
          %v904 = vpop.f32.mrf.mxu0
          %v905 = vadd.f32 0.0, %v904
          %v906 = vpop.f32.mrf.mxu0
          %v907 = vadd.f32 0.0, %v906
          %908 = vdwg.mxu0
          %v913 = vunpack.c.l.b16 %v817
          %v914 = vunpack.c.l.b16 %v818
          %v915 = vunpack.c.l.b16 %v825
          %v916 = vunpack.c.l.b16 %v826
          %v917 = vpack.c.b16 %v914, %v913
          %v918 = vpack.c.b16 %v916, %v915
          %v927 = vunpack.c.l.b16 %v833
          %v928 = vunpack.c.l.b16 %v834
          %v929 = vunpack.c.l.b16 %v835
          %v930 = vunpack.c.l.b16 %v836
          %v931 = vunpack.c.l.b16 %v837
          %v932 = vunpack.c.l.b16 %v838
          %v933 = vunpack.c.l.b16 %v839
          %v934 = vunpack.c.l.b16 %v840
          %v935 = vpack.c.b16 %v928, %v927
          %v936 = vpack.c.b16 %v930, %v929
          %v937 = vpack.c.b16 %v932, %v931
          %v938 = vpack.c.b16 %v934, %v933
          %v944 = vsel %vm420, %v917, 0
          %v947 = vsel %vm420, %v918, 0
          %949 = vmatpush.bf16.msra.mxu0 0
          %950 = vmatpush.bf16.msra.mxu0 0
          %951 = vmatpush.bf16.msra.mxu0 0
          %952 = vmatpush.bf16.msra.mxu0 0
          %953 = vmatpush.bf16.msra.mxu0 %v938
          %954 = vmatpush.bf16.msra.mxu0 %v937
          %955 = vmatpush.bf16.msra.mxu0 %v936
          %956 = vmatpush.bf16.msra.mxu0 %v935
          %957 = vmatmul.bf16.gmra.mxu0 %v944
          %v958 = vpop.f32.mrf.mxu0
          %v959 = vadd.f32 %v900, %v958
          %v960 = vpop.f32.mrf.mxu0
          %v961 = vadd.f32 %v902, %v960
          %962 = vmatmul.bf16.gmra.mxu0 %v947
          %v963 = vpop.f32.mrf.mxu0
          %v964 = vadd.f32 %v905, %v963
          %v965 = vpop.f32.mrf.mxu0
          %v966 = vadd.f32 %v907, %v965
          %967 = vdwg.mxu0
          %s968 = scalar_lea.vmem %s3, 64
          %v969 = vld [vmem:[%s968] sm:$0xf]
          %v970 = vld [vmem:[%s968 + $0x4] sm:$0xf]
          %v971 = vld [vmem:[%s968 + $0x8] sm:$0xf]
          %v972 = vld [vmem:[%s968 + $0xc] sm:$0xf]
          %v973 = vld [vmem:[%s968 + $0x10] sm:$0xf]
          %v974 = vld [vmem:[%s968 + $0x14] sm:$0xf]
          %v975 = vld [vmem:[%s968 + $0x18] sm:$0xf]
          %v976 = vld [vmem:[%s968 + $0x1c] sm:$0xf]
          %v981 = vunpack.c.l.b16 %v821
          %v982 = vunpack.c.l.b16 %v822
          %v983 = vunpack.c.l.b16 %v829
          %v984 = vunpack.c.l.b16 %v830
          %v985 = vpack.c.b16 %v982, %v981
          %v986 = vpack.c.b16 %v984, %v983
          %v995 = vunpack.c.l.b16 %v969
          %v996 = vunpack.c.l.b16 %v970
          %v997 = vunpack.c.l.b16 %v971
          %v998 = vunpack.c.l.b16 %v972
          %v999 = vunpack.c.l.b16 %v973
          %v1000 = vunpack.c.l.b16 %v974
          %v1001 = vunpack.c.l.b16 %v975
          %v1002 = vunpack.c.l.b16 %v976
          %v1003 = vpack.c.b16 %v996, %v995
          %v1004 = vpack.c.b16 %v998, %v997
          %v1005 = vpack.c.b16 %v1000, %v999
          %v1006 = vpack.c.b16 %v1002, %v1001
          %v1012 = vsel %vm420, %v985, 0
          %v1015 = vsel %vm420, %v986, 0
          %1017 = vmatpush.bf16.msra.mxu0 0
          %1018 = vmatpush.bf16.msra.mxu0 0
          %1019 = vmatpush.bf16.msra.mxu0 0
          %1020 = vmatpush.bf16.msra.mxu0 0
          %1021 = vmatpush.bf16.msra.mxu0 %v1006
          %1022 = vmatpush.bf16.msra.mxu0 %v1005
          %1023 = vmatpush.bf16.msra.mxu0 %v1004
          %1024 = vmatpush.bf16.msra.mxu0 %v1003
          %1025 = vmatmul.bf16.gmra.mxu0 %v1012
          %v1026 = vpop.f32.mrf.mxu0
          %v1027 = vadd.f32 0.0, %v1026
          %v1028 = vpop.f32.mrf.mxu0
          %v1029 = vadd.f32 0.0, %v1028
          %1030 = vmatmul.bf16.gmra.mxu0 %v1015
          %v1031 = vpop.f32.mrf.mxu0
          %v1032 = vadd.f32 0.0, %v1031
          %v1033 = vpop.f32.mrf.mxu0
          %v1034 = vadd.f32 0.0, %v1033
          %1035 = vdwg.mxu0
          %v1036 = vadd.f32 %v959, %v1027
          %v1037 = vadd.f32 %v961, %v1029
          %v1038 = vadd.f32 %v964, %v1032
          %v1039 = vadd.f32 %v966, %v1034
          %s1040 = scalar_lea.vmem %s3, 96
          %v1041 = vld [vmem:[%s1040] sm:$0xf]
          %v1042 = vld [vmem:[%s1040 + $0x4] sm:$0xf]
          %v1043 = vld [vmem:[%s1040 + $0x8] sm:$0xf]
          %v1044 = vld [vmem:[%s1040 + $0xc] sm:$0xf]
          %v1045 = vld [vmem:[%s1040 + $0x10] sm:$0xf]
          %v1046 = vld [vmem:[%s1040 + $0x14] sm:$0xf]
          %v1047 = vld [vmem:[%s1040 + $0x18] sm:$0xf]
          %v1048 = vld [vmem:[%s1040 + $0x1c] sm:$0xf]
          %v1053 = vunpack.c.l.b16 %v823
          %v1054 = vunpack.c.l.b16 %v824
          %v1055 = vunpack.c.l.b16 %v831
          %v1056 = vunpack.c.l.b16 %v832
          %v1057 = vpack.c.b16 %v1054, %v1053
          %v1058 = vpack.c.b16 %v1056, %v1055
          %v1067 = vunpack.c.l.b16 %v1041
          %v1068 = vunpack.c.l.b16 %v1042
          %v1069 = vunpack.c.l.b16 %v1043
          %v1070 = vunpack.c.l.b16 %v1044
          %v1071 = vunpack.c.l.b16 %v1045
          %v1072 = vunpack.c.l.b16 %v1046
          %v1073 = vunpack.c.l.b16 %v1047
          %v1074 = vunpack.c.l.b16 %v1048
          %v1075 = vpack.c.b16 %v1068, %v1067
          %v1076 = vpack.c.b16 %v1070, %v1069
          %v1077 = vpack.c.b16 %v1072, %v1071
          %v1078 = vpack.c.b16 %v1074, %v1073
          %v1084 = vsel %vm420, %v1057, 0
          %v1087 = vsel %vm420, %v1058, 0
          %1089 = vmatpush.bf16.msra.mxu0 0
          %1090 = vmatpush.bf16.msra.mxu0 0
          %1091 = vmatpush.bf16.msra.mxu0 0
          %1092 = vmatpush.bf16.msra.mxu0 0
          %1093 = vmatpush.bf16.msra.mxu0 %v1078
          %1094 = vmatpush.bf16.msra.mxu0 %v1077
          %1095 = vmatpush.bf16.msra.mxu0 %v1076
          %1096 = vmatpush.bf16.msra.mxu0 %v1075
          %1097 = vmatmul.bf16.gmra.mxu0 %v1084
          %v1098 = vpop.f32.mrf.mxu0
          %v1099 = vadd.f32 0.0, %v1098
          %v1100 = vpop.f32.mrf.mxu0
          %v1101 = vadd.f32 0.0, %v1100
          %1102 = vmatmul.bf16.gmra.mxu0 %v1087
          %v1103 = vpop.f32.mrf.mxu0
          %v1104 = vadd.f32 0.0, %v1103
          %v1105 = vpop.f32.mrf.mxu0
          %v1106 = vadd.f32 0.0, %v1105
          %1107 = vdwg.mxu0
          %v1108 = vadd.f32 %v1036, %v1099
          %v1109 = vadd.f32 %v1037, %v1101
          %v1110 = vadd.f32 %v1038, %v1104
          %v1111 = vadd.f32 %v1039, %v1106
          %v1112 = vld [vmem:[%s4] sm:$0x1]
          %v1113 = vperm.slane %v1112, 0
          %v1114 = vadd.f32 %v1108, %v1113
          %v1115 = vadd.f32 %v1109, %v1113
          %v1116 = vadd.f32 %v1110, %v1113
          %v1117 = vadd.f32 %v1111, %v1113
          %v1118 = vld [vmem:[%s1] sm:$0xff]
          %v1119 = vld [vmem:[%s1 + $0x8] sm:$0xff]
          %v1120 = vadd.f32 %v1118, %v1114
          %v1121 = vadd.f32 %v1119, %v1115
          %v1122 = vadd.f32 %v1118, %v1116
          %v1123 = vadd.f32 %v1119, %v1117
          %v1124 = vld [vmem:[%s4 + $0x1] sm:$0x1]
          %v1125 = vld [vmem:[%s4 + $0x2] sm:$0x1]
          %v1126 = vsel %vm420, %v1120, 0.0
          %1127 = vadd.xlane.f32.xlu0 %v1126
          %v1128 = vpop.xlane.xlu0 %1127
          %v1129 = vsel %vm420, %v1121, 0.0
          %1130 = vadd.xlane.f32.xlu0 %v1129
          %v1131 = vpop.xlane.xlu0 %1130
          %v1132 = vsel %vm420, %v1122, 0.0
          %1133 = vadd.xlane.f32.xlu0 %v1132
          %v1134 = vpop.xlane.xlu0 %1133
          %v1135 = vsel %vm420, %v1123, 0.0
          %1136 = vadd.xlane.f32.xlu0 %v1135
          %v1137 = vpop.xlane.xlu0 %1136
          %v1138 = vrcp.pop 64.0
          %v1139 = vmul.f32 64.0, %v1138
          %v1140 = vsub.f32 1.0, %v1139
          %v1141 = vmul.f32 %v1138, %v1140
          %v1142 = vadd.f32 %v1138, %v1141
          %vm1143 = vweird.f32 %v1138
          %v1144 = vsel %vm1143, %v1138, %v1142
          %v1145 = vmul.f32 %v1128, %v1144
          %v1146 = vmul.f32 %v1131, %v1144
          %v1147 = vmul.f32 %v1134, %v1144
          %v1148 = vmul.f32 %v1137, %v1144
          %v1149 = vsub.f32 %v1120, %v1145
          %v1150 = vsub.f32 %v1121, %v1146
          %v1151 = vsub.f32 %v1122, %v1147
          %v1152 = vsub.f32 %v1123, %v1148
          %v1153 = vmul.f32 %v1149, %v1149
          %v1154 = vmul.f32 %v1150, %v1150
          %v1155 = vmul.f32 %v1151, %v1151
          %v1156 = vmul.f32 %v1152, %v1152
          %v1157 = vsel %vm420, %v1153, 0.0
          %1158 = vadd.xlane.f32.xlu0 %v1157
          %v1159 = vpop.xlane.xlu0 %1158
          %v1160 = vsel %vm420, %v1154, 0.0
          %1161 = vadd.xlane.f32.xlu0 %v1160
          %v1162 = vpop.xlane.xlu0 %1161
          %v1163 = vsel %vm420, %v1155, 0.0
          %1164 = vadd.xlane.f32.xlu0 %v1163
          %v1165 = vpop.xlane.xlu0 %1164
          %v1166 = vsel %vm420, %v1156, 0.0
          %1167 = vadd.xlane.f32.xlu0 %v1166
          %v1168 = vpop.xlane.xlu0 %1167
          %v1169 = vmul.f32 %v1159, %v1144
          %v1170 = vmul.f32 %v1162, %v1144
          %v1171 = vmul.f32 %v1165, %v1144
          %v1172 = vmul.f32 %v1168, %v1144
          %v1173 = vadd.f32 %v1169, 1e-05
          %v1174 = vadd.f32 %v1170, 1e-05
          %v1175 = vadd.f32 %v1171, 1e-05
          %v1176 = vadd.f32 %v1172, 1e-05
          %v1177 = vrsqrt.pop %v1173
          %v1178 = vmul.f32 %v1177, %v1173
          %v1179 = vmul.f32 %v1178, %v1177
          %v1180 = vmul.f32 0.5, %v1179
          %v1181 = vsub.f32 1.5, %v1180
          %v1182 = vmul.f32 %v1177, %v1181
          %vm1183 = vweird.f32 %v1173
          %vm1184 = vweird.f32 %v1177
          %vm1185 = vmor %vm1183, %vm1184
          %v1186 = vsel %vm1185, %v1177, %v1182
          %v1187 = vrsqrt.pop %v1174
          %v1188 = vmul.f32 %v1187, %v1174
          %v1189 = vmul.f32 %v1188, %v1187
          %v1190 = vmul.f32 0.5, %v1189
          %v1191 = vsub.f32 1.5, %v1190
          %v1192 = vmul.f32 %v1187, %v1191
          %vm1193 = vweird.f32 %v1174
          %vm1194 = vweird.f32 %v1187
          %vm1195 = vmor %vm1193, %vm1194
          %v1196 = vsel %vm1195, %v1187, %v1192
          %v1197 = vrsqrt.pop %v1175
          %v1198 = vmul.f32 %v1197, %v1175
          %v1199 = vmul.f32 %v1198, %v1197
          %v1200 = vmul.f32 0.5, %v1199
          %v1201 = vsub.f32 1.5, %v1200
          %v1202 = vmul.f32 %v1197, %v1201
          %vm1203 = vweird.f32 %v1175
          %vm1204 = vweird.f32 %v1197
          %vm1205 = vmor %vm1203, %vm1204
          %v1206 = vsel %vm1205, %v1197, %v1202
          %v1207 = vrsqrt.pop %v1176
          %v1208 = vmul.f32 %v1207, %v1176
          %v1209 = vmul.f32 %v1208, %v1207
          %v1210 = vmul.f32 0.5, %v1209
          %v1211 = vsub.f32 1.5, %v1210
          %v1212 = vmul.f32 %v1207, %v1211
          %vm1213 = vweird.f32 %v1176
          %vm1214 = vweird.f32 %v1207
          %vm1215 = vmor %vm1213, %vm1214
          %v1216 = vsel %vm1215, %v1207, %v1212
          %v1217 = vmul.f32 %v1149, %v1186
          %v1218 = vmul.f32 %v1150, %v1196
          %v1219 = vmul.f32 %v1151, %v1206
          %v1220 = vmul.f32 %v1152, %v1216
          %v1221 = vperm.slane %v1124, 0
          %v1222 = vmul.f32 %v1217, %v1221
          %v1223 = vmul.f32 %v1218, %v1221
          %v1224 = vmul.f32 %v1219, %v1221
          %v1225 = vmul.f32 %v1220, %v1221
          %v1226 = vperm.slane %v1125, 0
          %v1227 = vadd.f32 %v1222, %v1226
          %v1228 = vadd.f32 %v1223, %v1226
          %v1229 = vadd.f32 %v1224, %v1226
          %v1230 = vadd.f32 %v1225, %v1226
          %1231 = vst.msk [vmem:[#allocation2] sm:$0xff] %vm420, %v1227
          %1232 = vst.msk [vmem:[#allocation2 + $0x8] sm:$0xff] %vm420, %v1228
          %1233 = vst.msk [vmem:[#allocation2 + $0x10] sm:$0xff] %vm420, %v1229
          %1234 = vst.msk [vmem:[#allocation2 + $0x18] sm:$0xff] %vm420, %v1230
          %1235 = vst.msk [vmem:[#allocation3] sm:$0xff] %vm420, 0.0
          %1236 = vst.msk [vmem:[#allocation3 + $0x8] sm:$0xff] %vm420, 0.0
          %1237 = vst.msk [vmem:[#allocation3 + $0x10] sm:$0xff] %vm420, 0.0
          %1238 = vst.msk [vmem:[#allocation3 + $0x18] sm:$0xff] %vm420, 0.0
        $region79: #{perceiver_forward.1} parent=70 // pred_fallthru
          _
        %v1239 = vld [vmem:[#allocation2] sm:$0xff]
        %v1240 = vld [vmem:[#allocation2 + $0x8] sm:$0xff]
        %v1241 = vld [vmem:[#allocation2 + $0x10] sm:$0xff]
        %v1242 = vld [vmem:[#allocation2 + $0x18] sm:$0xff]
        %v1243 = vpack.c.bf16 %v1240, %v1239
        %v1244 = vpack.c.bf16 %v1242, %v1241
        %v1245 = vld [vmem:[%s336] sm:$0xff]
        %v1246 = vld [vmem:[%s336 + $0x8] sm:$0xff]
        %v1247 = vld [vmem:[%s336 + $0x10] sm:$0xff]
        %v1248 = vld [vmem:[%s336 + $0x18] sm:$0xff]
        %v1249 = vld [vmem:[%s336 + $0x20] sm:$0xff]
        %v1250 = vld [vmem:[%s336 + $0x28] sm:$0xff]
        %v1251 = vld [vmem:[%s336 + $0x30] sm:$0xff]
        %v1252 = vld [vmem:[%s336 + $0x38] sm:$0xff]
        %v1253 = vld [vmem:[%s336 + $0x40] sm:$0xff]
        %v1254 = vld [vmem:[%s336 + $0x48] sm:$0xff]
        %v1255 = vld [vmem:[%s336 + $0x50] sm:$0xff]
        %v1256 = vld [vmem:[%s336 + $0x58] sm:$0xff]
        %v1257 = vld [vmem:[%s336 + $0x60] sm:$0xff]
        %v1258 = vld [vmem:[%s336 + $0x68] sm:$0xff]
        %v1259 = vld [vmem:[%s336 + $0x70] sm:$0xff]
        %v1260 = vld [vmem:[%s336 + $0x78] sm:$0xff]
        %v1261 = vld [vmem:[%s375] sm:$0xf]
        %v1263 = vperm.slane %v1261, 0
        %v1264 = vperm.slane %v1261, 1
        %v1265 = vperm.slane %v1261, 2
        %v1266 = vperm.slane %v1261, 3
        %v1287 = vunpack.c.l.b16 %v1245
        %v1288 = vunpack.c.h.b16 %v1245
        %v1289 = vunpack.c.l.b16 %v1246
        %v1290 = vunpack.c.h.b16 %v1246
        %v1291 = vunpack.c.l.b16 %v1247
        %v1292 = vunpack.c.h.b16 %v1247
        %v1293 = vunpack.c.l.b16 %v1248
        %v1294 = vunpack.c.h.b16 %v1248
        %v1295 = vunpack.c.l.b16 %v1249
        %v1296 = vunpack.c.h.b16 %v1249
        %v1297 = vunpack.c.l.b16 %v1250
        %v1298 = vunpack.c.h.b16 %v1250
        %v1299 = vunpack.c.l.b16 %v1251
        %v1300 = vunpack.c.h.b16 %v1251
        %v1301 = vunpack.c.l.b16 %v1252
        %v1302 = vunpack.c.h.b16 %v1252
        %v1303 = vunpack.c.l.b16 %v1253
        %v1304 = vunpack.c.h.b16 %v1253
        %v1305 = vunpack.c.l.b16 %v1254
        %v1306 = vunpack.c.h.b16 %v1254
        %v1307 = vunpack.c.l.b16 %v1255
        %v1308 = vunpack.c.h.b16 %v1255
        %v1309 = vunpack.c.l.b16 %v1256
        %v1310 = vunpack.c.h.b16 %v1256
        %v1311 = vunpack.c.l.b16 %v1257
        %v1312 = vunpack.c.h.b16 %v1257
        %v1313 = vunpack.c.l.b16 %v1258
        %v1314 = vunpack.c.h.b16 %v1258
        %v1315 = vunpack.c.l.b16 %v1259
        %v1316 = vunpack.c.h.b16 %v1259
        %v1317 = vunpack.c.l.b16 %v1260
        %v1318 = vunpack.c.h.b16 %v1260
        %v1319 = vpack.c.b16 %v1291, %v1287
        %v1320 = vpack.c.b16 %v1292, %v1288
        %v1321 = vpack.c.b16 %v1293, %v1289
        %v1322 = vpack.c.b16 %v1294, %v1290
        %v1323 = vpack.c.b16 %v1299, %v1295
        %v1324 = vpack.c.b16 %v1300, %v1296
        %v1325 = vpack.c.b16 %v1301, %v1297
        %v1326 = vpack.c.b16 %v1302, %v1298
        %v1327 = vpack.c.b16 %v1307, %v1303
        %v1328 = vpack.c.b16 %v1308, %v1304
        %v1329 = vpack.c.b16 %v1309, %v1305
        %v1330 = vpack.c.b16 %v1310, %v1306
        %v1331 = vpack.c.b16 %v1315, %v1311
        %v1332 = vpack.c.b16 %v1316, %v1312
        %v1333 = vpack.c.b16 %v1317, %v1313
        %v1334 = vpack.c.b16 %v1318, %v1314
        %vm1351 = vcmask 523264
        %v1353 = vsel %vm1351, %v1243, 0
        %v1356 = vsel %vm1351, %v1244, 0
        %1358 = vmatpush.bf16.msra.mxu0 0
        %1359 = vmatpush.bf16.msra.mxu0 0
        %1360 = vmatpush.bf16.msra.mxu0 0
        %1361 = vmatpush.bf16.msra.mxu0 0
        %1362 = vmatpush.bf16.msra.mxu0 %v1331
        %1363 = vmatpush.bf16.msra.mxu0 %v1327
        %1364 = vmatpush.bf16.msra.mxu0 %v1323
        %1365 = vmatpush.bf16.msra.mxu0 %v1319
        %1366 = vmatmul.bf16.gmra.mxu0 %v1353
        %v1367 = vpop.f32.mrf.mxu0
        %v1368 = vadd.f32 %v1263, %v1367
        %v1369 = vpop.f32.mrf.mxu0
        %v1370 = vadd.f32 %v1263, %v1369
        %1371 = vmatmul.bf16.gmra.mxu0 %v1356
        %v1372 = vpop.f32.mrf.mxu0
        %v1373 = vadd.f32 %v1263, %v1372
        %v1374 = vpop.f32.mrf.mxu0
        %v1375 = vadd.f32 %v1263, %v1374
        %1376 = vdwg.mxu0
        %1377 = vmatpush.bf16.msra.mxu0 0
        %1378 = vmatpush.bf16.msra.mxu0 0
        %1379 = vmatpush.bf16.msra.mxu0 0
        %1380 = vmatpush.bf16.msra.mxu0 0
        %1381 = vmatpush.bf16.msra.mxu0 %v1332
        %1382 = vmatpush.bf16.msra.mxu0 %v1328
        %1383 = vmatpush.bf16.msra.mxu0 %v1324
        %1384 = vmatpush.bf16.msra.mxu0 %v1320
        %1385 = vmatmul.bf16.gmra.mxu0 %v1353
        %v1386 = vpop.f32.mrf.mxu0
        %v1387 = vadd.f32 %v1264, %v1386
        %v1388 = vpop.f32.mrf.mxu0
        %v1389 = vadd.f32 %v1264, %v1388
        %1390 = vmatmul.bf16.gmra.mxu0 %v1356
        %v1391 = vpop.f32.mrf.mxu0
        %v1392 = vadd.f32 %v1264, %v1391
        %v1393 = vpop.f32.mrf.mxu0
        %v1394 = vadd.f32 %v1264, %v1393
        %1395 = vdwg.mxu0
        %1396 = vmatpush.bf16.msra.mxu0 0
        %1397 = vmatpush.bf16.msra.mxu0 0
        %1398 = vmatpush.bf16.msra.mxu0 0
        %1399 = vmatpush.bf16.msra.mxu0 0
        %1400 = vmatpush.bf16.msra.mxu0 %v1333
        %1401 = vmatpush.bf16.msra.mxu0 %v1329
        %1402 = vmatpush.bf16.msra.mxu0 %v1325
        %1403 = vmatpush.bf16.msra.mxu0 %v1321
        %1404 = vmatmul.bf16.gmra.mxu0 %v1353
        %v1405 = vpop.f32.mrf.mxu0
        %v1406 = vadd.f32 %v1265, %v1405
        %v1407 = vpop.f32.mrf.mxu0
        %v1408 = vadd.f32 %v1265, %v1407
        %1409 = vmatmul.bf16.gmra.mxu0 %v1356
        %v1410 = vpop.f32.mrf.mxu0
        %v1411 = vadd.f32 %v1265, %v1410
        %v1412 = vpop.f32.mrf.mxu0
        %v1413 = vadd.f32 %v1265, %v1412
        %1414 = vdwg.mxu0
        %1415 = vmatpush.bf16.msra.mxu0 0
        %1416 = vmatpush.bf16.msra.mxu0 0
        %1417 = vmatpush.bf16.msra.mxu0 0
        %1418 = vmatpush.bf16.msra.mxu0 0
        %1419 = vmatpush.bf16.msra.mxu0 %v1334
        %1420 = vmatpush.bf16.msra.mxu0 %v1330
        %1421 = vmatpush.bf16.msra.mxu0 %v1326
        %1422 = vmatpush.bf16.msra.mxu0 %v1322
        %1423 = vmatmul.bf16.gmra.mxu0 %v1353
        %v1424 = vpop.f32.mrf.mxu0
        %v1425 = vadd.f32 %v1266, %v1424
        %v1426 = vpop.f32.mrf.mxu0
        %v1427 = vadd.f32 %v1266, %v1426
        %1428 = vmatmul.bf16.gmra.mxu0 %v1356
        %v1429 = vpop.f32.mrf.mxu0
        %v1430 = vadd.f32 %v1266, %v1429
        %v1431 = vpop.f32.mrf.mxu0
        %v1432 = vadd.f32 %v1266, %v1431
        %1433 = vdwg.mxu0
        %v1434 = vmax.f32 %v1368, 0.0
        %v1435 = vmax.f32 %v1387, 0.0
        %v1436 = vmax.f32 %v1406, 0.0
        %v1437 = vmax.f32 %v1425, 0.0
        %v1438 = vmax.f32 %v1370, 0.0
        %v1439 = vmax.f32 %v1389, 0.0
        %v1440 = vmax.f32 %v1408, 0.0
        %v1441 = vmax.f32 %v1427, 0.0
        %v1442 = vmax.f32 %v1373, 0.0
        %v1443 = vmax.f32 %v1392, 0.0
        %v1444 = vmax.f32 %v1411, 0.0
        %v1445 = vmax.f32 %v1430, 0.0
        %v1446 = vmax.f32 %v1375, 0.0
        %v1447 = vmax.f32 %v1394, 0.0
        %v1448 = vmax.f32 %v1413, 0.0
        %v1449 = vmax.f32 %v1432, 0.0
        %v1450 = vld [vmem:[#allocation3] sm:$0xff]
        %v1451 = vld [vmem:[#allocation3 + $0x8] sm:$0xff]
        %v1452 = vld [vmem:[#allocation3 + $0x10] sm:$0xff]
        %v1453 = vld [vmem:[#allocation3 + $0x18] sm:$0xff]
        %v1454 = vpack.c.bf16 %v1438, %v1434
        %v1455 = vpack.c.bf16 %v1439, %v1435
        %v1456 = vpack.c.bf16 %v1440, %v1436
        %v1457 = vpack.c.bf16 %v1441, %v1437
        %v1458 = vpack.c.bf16 %v1446, %v1442
        %v1459 = vpack.c.bf16 %v1447, %v1443
        %v1460 = vpack.c.bf16 %v1448, %v1444
        %v1461 = vpack.c.bf16 %v1449, %v1445
        %v1462 = vld [vmem:[%s381] sm:$0xf]
        %v1463 = vld [vmem:[%s381 + $0x4] sm:$0xf]
        %v1464 = vld [vmem:[%s381 + $0x8] sm:$0xf]
        %v1465 = vld [vmem:[%s381 + $0xc] sm:$0xf]
        %v1466 = vld [vmem:[%s381 + $0x10] sm:$0xf]
        %v1467 = vld [vmem:[%s381 + $0x14] sm:$0xf]
        %v1468 = vld [vmem:[%s381 + $0x18] sm:$0xf]
        %v1469 = vld [vmem:[%s381 + $0x1c] sm:$0xf]
        %v1470 = vld [vmem:[%s381 + $0x20] sm:$0xf]
        %v1471 = vld [vmem:[%s381 + $0x24] sm:$0xf]
        %v1472 = vld [vmem:[%s381 + $0x28] sm:$0xf]
        %v1473 = vld [vmem:[%s381 + $0x2c] sm:$0xf]
        %v1474 = vld [vmem:[%s381 + $0x30] sm:$0xf]
        %v1475 = vld [vmem:[%s381 + $0x34] sm:$0xf]
        %v1476 = vld [vmem:[%s381 + $0x38] sm:$0xf]
        %v1477 = vld [vmem:[%s381 + $0x3c] sm:$0xf]
        %v1478 = vld [vmem:[%s381 + $0x40] sm:$0xf]
        %v1479 = vld [vmem:[%s381 + $0x44] sm:$0xf]
        %v1480 = vld [vmem:[%s381 + $0x48] sm:$0xf]
        %v1481 = vld [vmem:[%s381 + $0x4c] sm:$0xf]
        %v1482 = vld [vmem:[%s381 + $0x50] sm:$0xf]
        %v1483 = vld [vmem:[%s381 + $0x54] sm:$0xf]
        %v1484 = vld [vmem:[%s381 + $0x58] sm:$0xf]
        %v1485 = vld [vmem:[%s381 + $0x5c] sm:$0xf]
        %v1486 = vld [vmem:[%s381 + $0x60] sm:$0xf]
        %v1487 = vld [vmem:[%s381 + $0x64] sm:$0xf]
        %v1488 = vld [vmem:[%s381 + $0x68] sm:$0xf]
        %v1489 = vld [vmem:[%s381 + $0x6c] sm:$0xf]
        %v1490 = vld [vmem:[%s381 + $0x70] sm:$0xf]
        %v1491 = vld [vmem:[%s381 + $0x74] sm:$0xf]
        %v1492 = vld [vmem:[%s381 + $0x78] sm:$0xf]
        %v1493 = vld [vmem:[%s381 + $0x7c] sm:$0xf]
        %v1494 = vld [vmem:[%s381 + $0x80] sm:$0xf]
        %v1495 = vld [vmem:[%s381 + $0x84] sm:$0xf]
        %v1496 = vld [vmem:[%s381 + $0x88] sm:$0xf]
        %v1497 = vld [vmem:[%s381 + $0x8c] sm:$0xf]
        %v1498 = vld [vmem:[%s381 + $0x90] sm:$0xf]
        %v1499 = vld [vmem:[%s381 + $0x94] sm:$0xf]
        %v1500 = vld [vmem:[%s381 + $0x98] sm:$0xf]
        %v1501 = vld [vmem:[%s381 + $0x9c] sm:$0xf]
        %v1502 = vld [vmem:[%s381 + $0xa0] sm:$0xf]
        %v1503 = vld [vmem:[%s381 + $0xa4] sm:$0xf]
        %v1504 = vld [vmem:[%s381 + $0xa8] sm:$0xf]
        %v1505 = vld [vmem:[%s381 + $0xac] sm:$0xf]
        %v1506 = vld [vmem:[%s381 + $0xb0] sm:$0xf]
        %v1507 = vld [vmem:[%s381 + $0xb4] sm:$0xf]
        %v1508 = vld [vmem:[%s381 + $0xb8] sm:$0xf]
        %v1509 = vld [vmem:[%s381 + $0xbc] sm:$0xf]
        %v1510 = vld [vmem:[%s381 + $0xc0] sm:$0xf]
        %v1511 = vld [vmem:[%s381 + $0xc4] sm:$0xf]
        %v1512 = vld [vmem:[%s381 + $0xc8] sm:$0xf]
        %v1513 = vld [vmem:[%s381 + $0xcc] sm:$0xf]
        %v1514 = vld [vmem:[%s381 + $0xd0] sm:$0xf]
        %v1515 = vld [vmem:[%s381 + $0xd4] sm:$0xf]
        %v1516 = vld [vmem:[%s381 + $0xd8] sm:$0xf]
        %v1517 = vld [vmem:[%s381 + $0xdc] sm:$0xf]
        %v1518 = vld [vmem:[%s381 + $0xe0] sm:$0xf]
        %v1519 = vld [vmem:[%s381 + $0xe4] sm:$0xf]
        %v1520 = vld [vmem:[%s381 + $0xe8] sm:$0xf]
        %v1521 = vld [vmem:[%s381 + $0xec] sm:$0xf]
        %v1522 = vld [vmem:[%s381 + $0xf0] sm:$0xf]
        %v1523 = vld [vmem:[%s381 + $0xf4] sm:$0xf]
        %v1524 = vld [vmem:[%s381 + $0xf8] sm:$0xf]
        %v1525 = vld [vmem:[%s381 + $0xfc] sm:$0xf]
        %v1590 = vunpack.c.l.b16 %v1462
        %v1591 = vunpack.c.l.b16 %v1463
        %v1592 = vunpack.c.l.b16 %v1464
        %v1593 = vunpack.c.l.b16 %v1465
        %v1594 = vunpack.c.l.b16 %v1466
        %v1595 = vunpack.c.l.b16 %v1467
        %v1596 = vunpack.c.l.b16 %v1468
        %v1597 = vunpack.c.l.b16 %v1469
        %v1598 = vunpack.c.l.b16 %v1470
        %v1599 = vunpack.c.l.b16 %v1471
        %v1600 = vunpack.c.l.b16 %v1472
        %v1601 = vunpack.c.l.b16 %v1473
        %v1602 = vunpack.c.l.b16 %v1474
        %v1603 = vunpack.c.l.b16 %v1475
        %v1604 = vunpack.c.l.b16 %v1476
        %v1605 = vunpack.c.l.b16 %v1477
        %v1606 = vunpack.c.l.b16 %v1478
        %v1607 = vunpack.c.l.b16 %v1479
        %v1608 = vunpack.c.l.b16 %v1480
        %v1609 = vunpack.c.l.b16 %v1481
        %v1610 = vunpack.c.l.b16 %v1482
        %v1611 = vunpack.c.l.b16 %v1483
        %v1612 = vunpack.c.l.b16 %v1484
        %v1613 = vunpack.c.l.b16 %v1485
        %v1614 = vunpack.c.l.b16 %v1486
        %v1615 = vunpack.c.l.b16 %v1487
        %v1616 = vunpack.c.l.b16 %v1488
        %v1617 = vunpack.c.l.b16 %v1489
        %v1618 = vunpack.c.l.b16 %v1490
        %v1619 = vunpack.c.l.b16 %v1491
        %v1620 = vunpack.c.l.b16 %v1492
        %v1621 = vunpack.c.l.b16 %v1493
        %v1622 = vunpack.c.l.b16 %v1494
        %v1623 = vunpack.c.l.b16 %v1495
        %v1624 = vunpack.c.l.b16 %v1496
        %v1625 = vunpack.c.l.b16 %v1497
        %v1626 = vunpack.c.l.b16 %v1498
        %v1627 = vunpack.c.l.b16 %v1499
        %v1628 = vunpack.c.l.b16 %v1500
        %v1629 = vunpack.c.l.b16 %v1501
        %v1630 = vunpack.c.l.b16 %v1502
        %v1631 = vunpack.c.l.b16 %v1503
        %v1632 = vunpack.c.l.b16 %v1504
        %v1633 = vunpack.c.l.b16 %v1505
        %v1634 = vunpack.c.l.b16 %v1506
        %v1635 = vunpack.c.l.b16 %v1507
        %v1636 = vunpack.c.l.b16 %v1508
        %v1637 = vunpack.c.l.b16 %v1509
        %v1638 = vunpack.c.l.b16 %v1510
        %v1639 = vunpack.c.l.b16 %v1511
        %v1640 = vunpack.c.l.b16 %v1512
        %v1641 = vunpack.c.l.b16 %v1513
        %v1642 = vunpack.c.l.b16 %v1514
        %v1643 = vunpack.c.l.b16 %v1515
        %v1644 = vunpack.c.l.b16 %v1516
        %v1645 = vunpack.c.l.b16 %v1517
        %v1646 = vunpack.c.l.b16 %v1518
        %v1647 = vunpack.c.l.b16 %v1519
        %v1648 = vunpack.c.l.b16 %v1520
        %v1649 = vunpack.c.l.b16 %v1521
        %v1650 = vunpack.c.l.b16 %v1522
        %v1651 = vunpack.c.l.b16 %v1523
        %v1652 = vunpack.c.l.b16 %v1524
        %v1653 = vunpack.c.l.b16 %v1525
        %v1654 = vpack.c.b16 %v1591, %v1590
        %v1655 = vpack.c.b16 %v1593, %v1592
        %v1656 = vpack.c.b16 %v1595, %v1594
        %v1657 = vpack.c.b16 %v1597, %v1596
        %v1658 = vpack.c.b16 %v1599, %v1598
        %v1659 = vpack.c.b16 %v1601, %v1600
        %v1660 = vpack.c.b16 %v1603, %v1602
        %v1661 = vpack.c.b16 %v1605, %v1604
        %v1662 = vpack.c.b16 %v1607, %v1606
        %v1663 = vpack.c.b16 %v1609, %v1608
        %v1664 = vpack.c.b16 %v1611, %v1610
        %v1665 = vpack.c.b16 %v1613, %v1612
        %v1666 = vpack.c.b16 %v1615, %v1614
        %v1667 = vpack.c.b16 %v1617, %v1616
        %v1668 = vpack.c.b16 %v1619, %v1618
        %v1669 = vpack.c.b16 %v1621, %v1620
        %v1670 = vpack.c.b16 %v1623, %v1622
        %v1671 = vpack.c.b16 %v1625, %v1624
        %v1672 = vpack.c.b16 %v1627, %v1626
        %v1673 = vpack.c.b16 %v1629, %v1628
        %v1674 = vpack.c.b16 %v1631, %v1630
        %v1675 = vpack.c.b16 %v1633, %v1632
        %v1676 = vpack.c.b16 %v1635, %v1634
        %v1677 = vpack.c.b16 %v1637, %v1636
        %v1678 = vpack.c.b16 %v1639, %v1638
        %v1679 = vpack.c.b16 %v1641, %v1640
        %v1680 = vpack.c.b16 %v1643, %v1642
        %v1681 = vpack.c.b16 %v1645, %v1644
        %v1682 = vpack.c.b16 %v1647, %v1646
        %v1683 = vpack.c.b16 %v1649, %v1648
        %v1684 = vpack.c.b16 %v1651, %v1650
        %v1685 = vpack.c.b16 %v1653, %v1652
        %1718 = vmatpush.bf16.msra.mxu0 %v1661
        %1719 = vmatpush.bf16.msra.mxu0 %v1660
        %1720 = vmatpush.bf16.msra.mxu0 %v1659
        %1721 = vmatpush.bf16.msra.mxu0 %v1658
        %1722 = vmatpush.bf16.msra.mxu0 %v1657
        %1723 = vmatpush.bf16.msra.mxu0 %v1656
        %1724 = vmatpush.bf16.msra.mxu0 %v1655
        %1725 = vmatpush.bf16.msra.mxu0 %v1654
        %1726 = vmatmul.bf16.gmra.mxu0 %v1454
        %v1727 = vpop.f32.mrf.mxu0
        %v1728 = vadd.f32 0.0, %v1727
        %v1729 = vpop.f32.mrf.mxu0
        %v1730 = vadd.f32 0.0, %v1729
        %1731 = vmatmul.bf16.gmra.mxu0 %v1458
        %v1732 = vpop.f32.mrf.mxu0
        %v1733 = vadd.f32 0.0, %v1732
        %v1734 = vpop.f32.mrf.mxu0
        %v1735 = vadd.f32 0.0, %v1734
        %1736 = vdwg.mxu0
        %1737 = vmatpush.bf16.msra.mxu0 %v1669
        %1738 = vmatpush.bf16.msra.mxu0 %v1668
        %1739 = vmatpush.bf16.msra.mxu0 %v1667
        %1740 = vmatpush.bf16.msra.mxu0 %v1666
        %1741 = vmatpush.bf16.msra.mxu0 %v1665
        %1742 = vmatpush.bf16.msra.mxu0 %v1664
        %1743 = vmatpush.bf16.msra.mxu0 %v1663
        %1744 = vmatpush.bf16.msra.mxu0 %v1662
        %1745 = vmatmul.bf16.gmra.mxu0 %v1455
        %v1746 = vpop.f32.mrf.mxu0
        %v1747 = vadd.f32 %v1728, %v1746
        %v1748 = vpop.f32.mrf.mxu0
        %v1749 = vadd.f32 %v1730, %v1748
        %1750 = vmatmul.bf16.gmra.mxu0 %v1459
        %v1751 = vpop.f32.mrf.mxu0
        %v1752 = vadd.f32 %v1733, %v1751
        %v1753 = vpop.f32.mrf.mxu0
        %v1754 = vadd.f32 %v1735, %v1753
        %1755 = vdwg.mxu0
        %1756 = vmatpush.bf16.msra.mxu0 %v1677
        %1757 = vmatpush.bf16.msra.mxu0 %v1676
        %1758 = vmatpush.bf16.msra.mxu0 %v1675
        %1759 = vmatpush.bf16.msra.mxu0 %v1674
        %1760 = vmatpush.bf16.msra.mxu0 %v1673
        %1761 = vmatpush.bf16.msra.mxu0 %v1672
        %1762 = vmatpush.bf16.msra.mxu0 %v1671
        %1763 = vmatpush.bf16.msra.mxu0 %v1670
        %1764 = vmatmul.bf16.gmra.mxu0 %v1456
        %v1765 = vpop.f32.mrf.mxu0
        %v1766 = vadd.f32 %v1747, %v1765
        %v1767 = vpop.f32.mrf.mxu0
        %v1768 = vadd.f32 %v1749, %v1767
        %1769 = vmatmul.bf16.gmra.mxu0 %v1460
        %v1770 = vpop.f32.mrf.mxu0
        %v1771 = vadd.f32 %v1752, %v1770
        %v1772 = vpop.f32.mrf.mxu0
        %v1773 = vadd.f32 %v1754, %v1772
        %1774 = vdwg.mxu0
        %1775 = vmatpush.bf16.msra.mxu0 %v1685
        %1776 = vmatpush.bf16.msra.mxu0 %v1684
        %1777 = vmatpush.bf16.msra.mxu0 %v1683
        %1778 = vmatpush.bf16.msra.mxu0 %v1682
        %1779 = vmatpush.bf16.msra.mxu0 %v1681
        %1780 = vmatpush.bf16.msra.mxu0 %v1680
        %1781 = vmatpush.bf16.msra.mxu0 %v1679
        %1782 = vmatpush.bf16.msra.mxu0 %v1678
        %1783 = vmatmul.bf16.gmra.mxu0 %v1457
        %v1784 = vpop.f32.mrf.mxu0
        %v1785 = vadd.f32 %v1766, %v1784
        %v1786 = vpop.f32.mrf.mxu0
        %v1787 = vadd.f32 %v1768, %v1786
        %1788 = vmatmul.bf16.gmra.mxu0 %v1461
        %v1789 = vpop.f32.mrf.mxu0
        %v1790 = vadd.f32 %v1771, %v1789
        %v1791 = vpop.f32.mrf.mxu0
        %v1792 = vadd.f32 %v1773, %v1791
        %1793 = vdwg.mxu0
        %v1794 = vadd.f32 %v1450, %v1785
        %v1795 = vadd.f32 %v1451, %v1787
        %v1796 = vadd.f32 %v1452, %v1790
        %v1797 = vadd.f32 %v1453, %v1792
        %1798 = vst.msk [vmem:[#allocation3] sm:$0xff] %vm1351, %v1794
        %1799 = vst.msk [vmem:[#allocation3 + $0x8] sm:$0xff] %vm1351, %v1795
        %1800 = vst.msk [vmem:[#allocation3 + $0x10] sm:$0xff] %vm1351, %v1796
        %1801 = vst.msk [vmem:[#allocation3 + $0x18] sm:$0xff] %vm1351, %v1797
        %p1802 = scmp.eq.s32.totalorder %s19, 3
        // Predicated region
        $region80: #{perceiver_forward.1} parent=70 // pred_check
          %p1803 = pneg %p1802
        $region81: #{perceiver_forward.1} parent=70 // pred_check_branch
          %1805 = sbr.rel (%p1803) target = $region83
        $region82: #{perceiver_forward.1} parent=70 // pred_region
          %v1806 = vld [vmem:[#allocation3] sm:$0xff]
          %v1807 = vld [vmem:[#allocation3 + $0x8] sm:$0xff]
          %v1808 = vld [vmem:[#allocation3 + $0x10] sm:$0xff]
          %v1809 = vld [vmem:[#allocation3 + $0x18] sm:$0xff]
          %v1810 = vld [vmem:[%s4 + $0x5] sm:$0x1]
          %v1811 = vperm.slane %v1810, 0
          %v1812 = vadd.f32 %v1806, %v1811
          %v1813 = vadd.f32 %v1807, %v1811
          %v1814 = vadd.f32 %v1808, %v1811
          %v1815 = vadd.f32 %v1809, %v1811
          %v1816 = vld [vmem:[#allocation2] sm:$0xff]
          %v1817 = vld [vmem:[#allocation2 + $0x8] sm:$0xff]
          %v1818 = vld [vmem:[#allocation2 + $0x10] sm:$0xff]
          %v1819 = vld [vmem:[#allocation2 + $0x18] sm:$0xff]
          %v1820 = vadd.f32 %v1816, %v1812
          %v1821 = vadd.f32 %v1817, %v1813
          %v1822 = vadd.f32 %v1818, %v1814
          %v1823 = vadd.f32 %v1819, %v1815
          %v1824 = vld [vmem:[%s4 + $0x3] sm:$0x1]
          %v1825 = vld [vmem:[%s4 + $0x4] sm:$0x1]
          %v1826 = vsel %vm1351, %v1820, 0.0
          %1827 = vadd.xlane.f32.xlu0 %v1826
          %v1828 = vpop.xlane.xlu0 %1827
          %v1829 = vsel %vm1351, %v1821, 0.0
          %1830 = vadd.xlane.f32.xlu0 %v1829
          %v1831 = vpop.xlane.xlu0 %1830
          %v1832 = vsel %vm1351, %v1822, 0.0
          %1833 = vadd.xlane.f32.xlu0 %v1832
          %v1834 = vpop.xlane.xlu0 %1833
          %v1835 = vsel %vm1351, %v1823, 0.0
          %1836 = vadd.xlane.f32.xlu0 %v1835
          %v1837 = vpop.xlane.xlu0 %1836
          %v1838 = vrcp.pop 64.0
          %v1839 = vmul.f32 64.0, %v1838
          %v1840 = vsub.f32 1.0, %v1839
          %v1841 = vmul.f32 %v1838, %v1840
          %v1842 = vadd.f32 %v1838, %v1841
          %vm1843 = vweird.f32 %v1838
          %v1844 = vsel %vm1843, %v1838, %v1842
          %v1845 = vmul.f32 %v1828, %v1844
          %v1846 = vmul.f32 %v1831, %v1844
          %v1847 = vmul.f32 %v1834, %v1844
          %v1848 = vmul.f32 %v1837, %v1844
          %v1849 = vsub.f32 %v1820, %v1845
          %v1850 = vsub.f32 %v1821, %v1846
          %v1851 = vsub.f32 %v1822, %v1847
          %v1852 = vsub.f32 %v1823, %v1848
          %v1853 = vmul.f32 %v1849, %v1849
          %v1854 = vmul.f32 %v1850, %v1850
          %v1855 = vmul.f32 %v1851, %v1851
          %v1856 = vmul.f32 %v1852, %v1852
          %v1857 = vsel %vm1351, %v1853, 0.0
          %1858 = vadd.xlane.f32.xlu0 %v1857
          %v1859 = vpop.xlane.xlu0 %1858
          %v1860 = vsel %vm1351, %v1854, 0.0
          %1861 = vadd.xlane.f32.xlu0 %v1860
          %v1862 = vpop.xlane.xlu0 %1861
          %v1863 = vsel %vm1351, %v1855, 0.0
          %1864 = vadd.xlane.f32.xlu0 %v1863
          %v1865 = vpop.xlane.xlu0 %1864
          %v1866 = vsel %vm1351, %v1856, 0.0
          %1867 = vadd.xlane.f32.xlu0 %v1866
          %v1868 = vpop.xlane.xlu0 %1867
          %v1869 = vmul.f32 %v1859, %v1844
          %v1870 = vmul.f32 %v1862, %v1844
          %v1871 = vmul.f32 %v1865, %v1844
          %v1872 = vmul.f32 %v1868, %v1844
          %v1873 = vadd.f32 %v1869, 1e-05
          %v1874 = vadd.f32 %v1870, 1e-05
          %v1875 = vadd.f32 %v1871, 1e-05
          %v1876 = vadd.f32 %v1872, 1e-05
          %v1877 = vrsqrt.pop %v1873
          %v1878 = vmul.f32 %v1877, %v1873
          %v1879 = vmul.f32 %v1878, %v1877
          %v1880 = vmul.f32 0.5, %v1879
          %v1881 = vsub.f32 1.5, %v1880
          %v1882 = vmul.f32 %v1877, %v1881
          %vm1883 = vweird.f32 %v1873
          %vm1884 = vweird.f32 %v1877
          %vm1885 = vmor %vm1883, %vm1884
          %v1886 = vsel %vm1885, %v1877, %v1882
          %v1887 = vrsqrt.pop %v1874
          %v1888 = vmul.f32 %v1887, %v1874
          %v1889 = vmul.f32 %v1888, %v1887
          %v1890 = vmul.f32 0.5, %v1889
          %v1891 = vsub.f32 1.5, %v1890
          %v1892 = vmul.f32 %v1887, %v1891
          %vm1893 = vweird.f32 %v1874
          %vm1894 = vweird.f32 %v1887
          %vm1895 = vmor %vm1893, %vm1894
          %v1896 = vsel %vm1895, %v1887, %v1892
          %v1897 = vrsqrt.pop %v1875
          %v1898 = vmul.f32 %v1897, %v1875
          %v1899 = vmul.f32 %v1898, %v1897
          %v1900 = vmul.f32 0.5, %v1899
          %v1901 = vsub.f32 1.5, %v1900
          %v1902 = vmul.f32 %v1897, %v1901
          %vm1903 = vweird.f32 %v1875
          %vm1904 = vweird.f32 %v1897
          %vm1905 = vmor %vm1903, %vm1904
          %v1906 = vsel %vm1905, %v1897, %v1902
          %v1907 = vrsqrt.pop %v1876
          %v1908 = vmul.f32 %v1907, %v1876
          %v1909 = vmul.f32 %v1908, %v1907
          %v1910 = vmul.f32 0.5, %v1909
          %v1911 = vsub.f32 1.5, %v1910
          %v1912 = vmul.f32 %v1907, %v1911
          %vm1913 = vweird.f32 %v1876
          %vm1914 = vweird.f32 %v1907
          %vm1915 = vmor %vm1913, %vm1914
          %v1916 = vsel %vm1915, %v1907, %v1912
          %v1917 = vmul.f32 %v1849, %v1886
          %v1918 = vmul.f32 %v1850, %v1896
          %v1919 = vmul.f32 %v1851, %v1906
          %v1920 = vmul.f32 %v1852, %v1916
          %v1921 = vperm.slane %v1824, 0
          %v1922 = vmul.f32 %v1917, %v1921
          %v1923 = vmul.f32 %v1918, %v1921
          %v1924 = vmul.f32 %v1919, %v1921
          %v1925 = vmul.f32 %v1920, %v1921
          %v1926 = vperm.slane %v1825, 0
          %v1927 = vadd.f32 %v1922, %v1926
          %v1928 = vadd.f32 %v1923, %v1926
          %v1929 = vadd.f32 %v1924, %v1926
          %v1930 = vadd.f32 %v1925, %v1926
          %v1931 = vsel %vm1351, %v1927, 0.0
          %v1932 = vsel %vm1351, %v1928, 0.0
          %v1933 = vadd.f32 %v1931, %v1932
          %v1934 = vrot.slane %v1933, 4
          %v1935 = vadd.f32 %v1933, %v1934
          %v1936 = vrot.slane %v1935, 2
          %v1937 = vadd.f32 %v1935, %v1936
          %v1938 = vrot.slane %v1937, 1
          %v1939 = vadd.f32 %v1937, %v1938
          %v1940 = vsel %vm1351, %v1929, 0.0
          %v1941 = vsel %vm1351, %v1930, 0.0
          %v1942 = vadd.f32 %v1940, %v1941
          %v1943 = vrot.slane %v1942, 4
          %v1944 = vadd.f32 %v1942, %v1943
          %v1945 = vrot.slane %v1944, 2
          %v1946 = vadd.f32 %v1944, %v1945
          %v1947 = vrot.slane %v1946, 1
          %v1948 = vadd.f32 %v1946, %v1947
          %v1949 = vmul.f32 %v1939, 0.0625
          %v1950 = vmul.f32 %v1948, 0.0625
          %1952 = vrot.lane.b32.xlu0 %v1950, 64
          %v1953 = vpop.permute.xlu0 %1952
          %v1955 = vsel %vm1351, %v1949, %v1953
          %1956 = vst [vmem:[%s8] sm:$0x1] %v1955
        $region83: #{perceiver_forward.1} parent=70 // pred_fallthru
          _
        // Predicated region
        $region84: #{perceiver_forward.1} parent=70 // pred_check
          %p1957 = pneg %p215
        $region85: #{perceiver_forward.1} parent=70 // pred_check_branch
          %1959 = sbr.rel (%p1957) target = $region87
        $region86: #{perceiver_forward.1} parent=70 // pred_region
          _
        $region87: #{perceiver_forward.1} parent=70 // pred_fallthru
          _
        // Predicated region
        $region88: #{perceiver_forward.1} parent=70 // pred_check
          %p1960 = pneg %p215
        $region89: #{perceiver_forward.1} parent=70 // pred_check_branch
          %1962 = sbr.rel (%p1960) target = $region91
        $region90: #{perceiver_forward.1} parent=70 // pred_region
          _
        $region91: #{perceiver_forward.1} parent=70 // pred_fallthru
          _
      $region71: #{perceiver_forward.1} parent=5 // pred_fallthru
        _
      %p1963 = scmp.le.s32.totalorder 2, %s14
      // Predicated region
      $region92: #{perceiver_forward.1} parent=5 // pred_check
        %p1964 = pneg %p1963
      $region93: #{perceiver_forward.1} parent=5 // pred_check_branch
        %1966 = sbr.rel (%p1964) target = $region95
      $region94: #{perceiver_forward.1} parent=5 // pred_region
        %s1967 = ssub.s32 %s14, 2
      $region95: #{perceiver_forward.1} parent=5 // pred_fallthru
        _
    $region6: #{perceiver_forward.1} parent=1 // loop_footer
      %s18 = sadd.s32 1, %s14
    $region7: #{perceiver_forward.1} parent=1 // loop_footer_branch
      %13 = sbr.rel target = $region3
    $region8: #{perceiver_forward.1} parent=1 // loop_exit
      _

</llo_original>
